<compile_context>
chip_gen: v5e
topology: v5e:2x2
jax: 0.10.0
libtpu: 0.0.40
codegen_flags: <defaults>
</compile_context>

<pallas_src>
import functools

import jax
import jax.numpy as jnp
from jax.experimental import pallas as pl
from jax.experimental.pallas import tpu as pltpu


def _fused_addnet_kernel(x_ref, mask_ref, w1_ref, b1_ref, w2_ref, b2_ref,
                         w3_ref, b3_ref, o_ref, act1_ref, act2_ref, taps_ref,
                         *, m0, lout, tap_offsets):
    """Three dilated 3x3 convs (ReLU, ReLU, Sigmoid), fully VMEM resident."""
    valid = mask_ref[...] > 0.5                     # (1, Lout) interior mask

    def conv(in_ref, w_ref, b_ref, act):
        cin = in_ref.shape[0]
        # Build the (9*Cin, Lout) tap matrix: 9 shifted lane-slices of the
        # padded activation stacked on the sublane axis of a VMEM scratch.
        for k, d in enumerate(tap_offsets):
            taps_ref[k * cin:(k + 1) * cin, :] = in_ref[:, m0 + d:m0 + d + lout]
        taps = taps_ref[0:9 * cin, :]
        # One MXU matmul per layer: (Cout, 9*Cin) x (9*Cin, Lout).
        acc = jnp.dot(w_ref[...], taps, preferred_element_type=jnp.float32)
        acc = acc + b_ref[...]                      # (Cout, 1) lane-broadcast
        if act == "relu":
            acc = jnp.maximum(acc, 0.0)
        else:                                       # sigmoid
            acc = jax.nn.sigmoid(acc)
        # Zero the ring / inter-image columns (select, so NaN-safe): these
        # become the next layer's zero padding.
        return jnp.where(valid, acc, 0.0)

    # Zero the activation scratch once so never-written margins are defined.
    act1_ref[...] = jnp.zeros_like(act1_ref)
    act2_ref[...] = jnp.zeros_like(act2_ref)

    act1_ref[:, m0:m0 + lout] = conv(x_ref, w1_ref, b1_ref, "relu")
    act2_ref[:, m0:m0 + lout] = conv(act1_ref, w2_ref, b2_ref, "relu")
    out = conv(act2_ref, w3_ref, b3_ref, "sigmoid")   # (8, Lout); rows 1..7 = pad
    o_ref[...] = out[0:1, :]


def addnet_forward(params, x_nchw):
    """AddNet forward; x is NCHW with a single input channel."""
    N, cin, H, W = x_nchw.shape
    assert cin == 1, "AddNet's first conv has in_channels=1"
    Hp, Wp = H + 4, W + 4
    L = Hp * Wp                                   # flattened padded frame
    m0 = 2 * Wp + 2                               # largest |dilated tap shift|
    Lext = ((L + 2 * m0 + 127) // 128) * 128      # per-image lane segment
    Ltot = N * Lext
    Lout = (N - 1) * Lext + L                     # columns the matmuls produce

    f32 = jnp.float32

    # ---- tiny plain-JAX glue: lane-flattened zero-padded input --------------
    xpad = jnp.pad(x_nchw.astype(f32), ((0, 0), (0, 0), (2, 2), (2, 2)))
    xseg = jnp.pad(xpad.reshape(N, L), ((0, 0), (m0, Lext - L - m0)))
    x_in = xseg.reshape(1, Ltot)

    # interior-output mask over the Lout window (1 = real output pixel)
    frame_mask = jnp.zeros((Hp, Wp), f32).at[2:2 + H, 2:2 + W].set(1.0)
    seg_mask = jnp.pad(frame_mask.reshape(L), (0, Lext - L))          # (Lext,)
    mask = jnp.tile(seg_mask, N)[:Lout].reshape(1, Lout)

    # weights: (Cout, Cin, 3, 3) -> (Cout, 9*Cin), tap-major to match the
    # sublane stacking order of the taps; biases as (Cout, 1).
    def prep(w, b, pad_to=None):
        cout, ci = w.shape[0], w.shape[1]
        w2d = jnp.transpose(w, (0, 2, 3, 1)).reshape(cout, 9 * ci).astype(f32)
        b2d = b.reshape(cout, 1).astype(f32)
        if pad_to is not None and pad_to > cout:
            w2d = jnp.pad(w2d, ((0, pad_to - cout), (0, 0)))
            b2d = jnp.pad(b2d, ((0, pad_to - cout), (0, 0)))
        return w2d, b2d

    w1, b1 = prep(*params["input"])               # (8, 9),  (8, 1)
    w2, b2 = prep(*params["conv2d"])              # (8, 72), (8, 1)
    w3, b3 = prep(*params["out"], pad_to=8)       # (8, 72), (8, 1) (Cout padded)

    tap_offsets = tuple((2 * ky - 2) * Wp + (2 * kx - 2)
                        for ky in range(3) for kx in range(3))
    kernel = functools.partial(_fused_addnet_kernel, m0=m0, lout=Lout,
                               tap_offsets=tap_offsets)

    def full(shape):
        return pl.BlockSpec(shape, lambda i: (0,) * len(shape))

    out = pl.pallas_call(
        kernel,
        out_shape=jax.ShapeDtypeStruct((1, Lout), f32),
        grid=(1,),
        in_specs=[full(x_in.shape), full(mask.shape),
                  full(w1.shape), full(b1.shape),
                  full(w2.shape), full(b2.shape),
                  full(w3.shape), full(b3.shape)],
        out_specs=full((1, Lout)),
        scratch_shapes=[pltpu.VMEM((8, Ltot), f32),     # layer-1 activation
                        pltpu.VMEM((8, Ltot), f32),     # layer-2 activation
                        pltpu.VMEM((72, Lout), f32)],   # tap matrix (9*Cin max)
        compiler_params=pltpu.CompilerParams(
            dimension_semantics=("arbitrary",)),
    )(x_in, mask, w1, b1, w2, b2, w3, b3)

    # ---- extract each image's HxW interior from its padded frame ------------
    y = jnp.stack([out[0, n * Lext:n * Lext + L] for n in range(N)], axis=0)
    y = y.reshape(N, 1, Hp, Wp)[:, :, 2:2 + H, 2:2 + W]
    return y


def init_params(key):
    """Deterministic PyTorch-Conv2d-style (uniform +-1/sqrt(fan_in)) init."""
    ks = jax.random.split(key, 6)

    def conv_init(kw, kb, cout, cin):
        fan_in = cin * 3 * 3
        bound = 1.0 / (fan_in ** 0.5)
        w = jax.random.uniform(kw, (cout, cin, 3, 3), jnp.float32, -bound, bound)
        b = jax.random.uniform(kb, (cout,), jnp.float32, -bound, bound)
        return w, b

    return {
        "input": conv_init(ks[0], ks[1], 8, 1),
        "conv2d": conv_init(ks[2], ks[3], 8, 8),
        "out": conv_init(ks[4], ks[5], 1, 8),
    }


def _ref_forward(params, x_nchw):
    """Pure-JAX reference (lax dilated conv) for the correctness check."""
    def conv(x, w, b):
        y = jax.lax.conv_general_dilated(
            x, w, window_strides=(1, 1), padding=((2, 2), (2, 2)),
            rhs_dilation=(2, 2),
            dimension_numbers=("NCHW", "OIHW", "NCHW"))
        return y + b.reshape(1, -1, 1, 1)

    h = jnp.maximum(conv(x_nchw, *params["input"]), 0.0)
    h = jnp.maximum(conv(h, *params["conv2d"]), 0.0)
    return jax.nn.sigmoid(conv(h, *params["out"]))


if __name__ == "__main__":
    key = jax.random.PRNGKey(0)
    kx, kp = jax.random.split(key)
    # Module's first conv has in_channels=1 -> input is (N, 1, H, W) NCHW.
    x = jax.random.normal(kx, (2, 1, 16, 16), jnp.float32)
    params = init_params(kp)

    y = jax.jit(addnet_forward)(params, x)
    y = jax.block_until_ready(y)

    assert y.shape == (2, 1, 16, 16)
    y_ref = _ref_forward(params, x)
    assert jnp.allclose(y, y_ref, atol=2e-3, rtol=2e-3), "mismatch vs reference"
    print("KERNEL_OK")
</pallas_src>

<mosaic_0001>
module attributes {stable_mosaic.version = 11 : i64} {
  func.func @_fused_addnet_kernel(%arg0: i32, %arg1: memref<1x1024xf32, #tpu.memory_space<vmem>>, %arg2: memref<1x912xf32, #tpu.memory_space<vmem>>, %arg3: memref<8x9xf32, #tpu.memory_space<vmem>>, %arg4: memref<8x1xf32, #tpu.memory_space<vmem>>, %arg5: memref<8x72xf32, #tpu.memory_space<vmem>>, %arg6: memref<8x1xf32, #tpu.memory_space<vmem>>, %arg7: memref<8x72xf32, #tpu.memory_space<vmem>>, %arg8: memref<8x1xf32, #tpu.memory_space<vmem>>, %arg9: memref<1x912xf32, #tpu.memory_space<vmem>>, %arg10: memref<8x1024xf32, #tpu.memory_space<vmem>>, %arg11: memref<8x1024xf32, #tpu.memory_space<vmem>>, %arg12: memref<72x912xf32, #tpu.memory_space<vmem>>) attributes {dimension_semantics = [#tpu.dimension_semantics<arbitrary>], iteration_bounds = array<i64: 1>, scalar_prefetch = 0 : i64, scratch_operands = 3 : i64, tpu.core_type = #tpu.core_type<tc>, window_params = [{pipeline_mode = #tpu.pipeline_mode<synchronous>, transform_indices = @transform_0, window_bounds = array<i64: 1, 1024>}, {pipeline_mode = #tpu.pipeline_mode<synchronous>, transform_indices = @transform_1, window_bounds = array<i64: 1, 912>}, {pipeline_mode = #tpu.pipeline_mode<synchronous>, transform_indices = @transform_2, window_bounds = array<i64: 8, 9>}, {pipeline_mode = #tpu.pipeline_mode<synchronous>, transform_indices = @transform_3, window_bounds = array<i64: 8, 1>}, {pipeline_mode = #tpu.pipeline_mode<synchronous>, transform_indices = @transform_4, window_bounds = array<i64: 8, 72>}, {pipeline_mode = #tpu.pipeline_mode<synchronous>, transform_indices = @transform_5, window_bounds = array<i64: 8, 1>}, {pipeline_mode = #tpu.pipeline_mode<synchronous>, transform_indices = @transform_6, window_bounds = array<i64: 8, 72>}, {pipeline_mode = #tpu.pipeline_mode<synchronous>, transform_indices = @transform_7, window_bounds = array<i64: 8, 1>}, {pipeline_mode = #tpu.pipeline_mode<synchronous>, transform_indices = @transform_8, window_bounds = array<i64: 1, 912>}]} {
    %c0 = arith.constant 0 : index
    %c0_0 = arith.constant 0 : index
    %0 = vector.load %arg2[%c0, %c0_0] : memref<1x912xf32, #tpu.memory_space<vmem>>, vector<1x912xf32>
    %cst = arith.constant 5.000000e-01 : f32
    %1 = vector.broadcast %cst : f32 to vector<1x912xf32>
    %2 = arith.cmpf ogt, %0, %1 : vector<1x912xf32>
    %cst_1 = arith.constant 0.000000e+00 : f32
    %3 = vector.broadcast %cst_1 : f32 to vector<8x1024xf32>
    %c0_2 = arith.constant 0 : index
    %c0_3 = arith.constant 0 : index
    %4 = vector.load %arg10[%c0_2, %c0_3] : memref<8x1024xf32, #tpu.memory_space<vmem>>, vector<8x1024xf32>
    tpu.vector_store %arg10[%c0_2, %c0_3], %3 {strides = array<i32>} : memref<8x1024xf32, #tpu.memory_space<vmem>>, vector<8x1024xf32>,
    %cst_4 = arith.constant 0.000000e+00 : f32
    %5 = vector.broadcast %cst_4 : f32 to vector<8x1024xf32>
    %c0_5 = arith.constant 0 : index
    %c0_6 = arith.constant 0 : index
    %6 = vector.load %arg11[%c0_5, %c0_6] : memref<8x1024xf32, #tpu.memory_space<vmem>>, vector<8x1024xf32>
    tpu.vector_store %arg11[%c0_5, %c0_6], %5 {strides = array<i32>} : memref<8x1024xf32, #tpu.memory_space<vmem>>, vector<8x1024xf32>,
    %c0_7 = arith.constant 0 : index
    %c0_8 = arith.constant 0 : index
    %7 = vector.load %arg1[%c0_7, %c0_8] : memref<1x1024xf32, #tpu.memory_space<vmem>>, vector<1x912xf32>
    %c0_9 = arith.constant 0 : index
    %c0_10 = arith.constant 0 : index
    %8 = vector.load %arg12[%c0_9, %c0_10] : memref<72x912xf32, #tpu.memory_space<vmem>>, vector<1x912xf32>
    tpu.vector_store %arg12[%c0_9, %c0_10], %7 {strides = array<i32>} : memref<72x912xf32, #tpu.memory_space<vmem>>, vector<1x912xf32>,
    %c0_11 = arith.constant 0 : index
    %c2 = arith.constant 2 : index
    %9 = vector.load %arg1[%c0_11, %c2] : memref<1x1024xf32, #tpu.memory_space<vmem>>, vector<1x912xf32>
    %c1 = arith.constant 1 : index
    %c0_12 = arith.constant 0 : index
    %10 = vector.load %arg12[%c1, %c0_12] : memref<72x912xf32, #tpu.memory_space<vmem>>, vector<1x912xf32>
    tpu.vector_store %arg12[%c1, %c0_12], %9 {strides = array<i32>} : memref<72x912xf32, #tpu.memory_space<vmem>>, vector<1x912xf32>,
    %c0_13 = arith.constant 0 : index
    %c4 = arith.constant 4 : index
    %11 = vector.load %arg1[%c0_13, %c4] : memref<1x1024xf32, #tpu.memory_space<vmem>>, vector<1x912xf32>
    %c2_14 = arith.constant 2 : index
    %c0_15 = arith.constant 0 : index
    %12 = vector.load %arg12[%c2_14, %c0_15] : memref<72x912xf32, #tpu.memory_space<vmem>>, vector<1x912xf32>
    tpu.vector_store %arg12[%c2_14, %c0_15], %11 {strides = array<i32>} : memref<72x912xf32, #tpu.memory_space<vmem>>, vector<1x912xf32>,
    %c0_16 = arith.constant 0 : index
    %c40 = arith.constant 40 : index
    %13 = vector.load %arg1[%c0_16, %c40] : memref<1x1024xf32, #tpu.memory_space<vmem>>, vector<1x912xf32>
    %c3 = arith.constant 3 : index
    %c0_17 = arith.constant 0 : index
    %14 = vector.load %arg12[%c3, %c0_17] : memref<72x912xf32, #tpu.memory_space<vmem>>, vector<1x912xf32>
    tpu.vector_store %arg12[%c3, %c0_17], %13 {strides = array<i32>} : memref<72x912xf32, #tpu.memory_space<vmem>>, vector<1x912xf32>,
    %c0_18 = arith.constant 0 : index
    %c42 = arith.constant 42 : index
    %15 = vector.load %arg1[%c0_18, %c42] : memref<1x1024xf32, #tpu.memory_space<vmem>>, vector<1x912xf32>
    %c4_19 = arith.constant 4 : index
    %c0_20 = arith.constant 0 : index
    %16 = vector.load %arg12[%c4_19, %c0_20] : memref<72x912xf32, #tpu.memory_space<vmem>>, vector<1x912xf32>
    tpu.vector_store %arg12[%c4_19, %c0_20], %15 {strides = array<i32>} : memref<72x912xf32, #tpu.memory_space<vmem>>, vector<1x912xf32>,
    %c0_21 = arith.constant 0 : index
    %c44 = arith.constant 44 : index
    %17 = vector.load %arg1[%c0_21, %c44] : memref<1x1024xf32, #tpu.memory_space<vmem>>, vector<1x912xf32>
    %c5 = arith.constant 5 : index
    %c0_22 = arith.constant 0 : index
    %18 = vector.load %arg12[%c5, %c0_22] : memref<72x912xf32, #tpu.memory_space<vmem>>, vector<1x912xf32>
    tpu.vector_store %arg12[%c5, %c0_22], %17 {strides = array<i32>} : memref<72x912xf32, #tpu.memory_space<vmem>>, vector<1x912xf32>,
    %c0_23 = arith.constant 0 : index
    %c80 = arith.constant 80 : index
    %19 = vector.load %arg1[%c0_23, %c80] : memref<1x1024xf32, #tpu.memory_space<vmem>>, vector<1x912xf32>
    %c6 = arith.constant 6 : index
    %c0_24 = arith.constant 0 : index
    %20 = vector.load %arg12[%c6, %c0_24] : memref<72x912xf32, #tpu.memory_space<vmem>>, vector<1x912xf32>
    tpu.vector_store %arg12[%c6, %c0_24], %19 {strides = array<i32>} : memref<72x912xf32, #tpu.memory_space<vmem>>, vector<1x912xf32>,
    %c0_25 = arith.constant 0 : index
    %c82 = arith.constant 82 : index
    %21 = vector.load %arg1[%c0_25, %c82] : memref<1x1024xf32, #tpu.memory_space<vmem>>, vector<1x912xf32>
    %c7 = arith.constant 7 : index
    %c0_26 = arith.constant 0 : index
    %22 = vector.load %arg12[%c7, %c0_26] : memref<72x912xf32, #tpu.memory_space<vmem>>, vector<1x912xf32>
    tpu.vector_store %arg12[%c7, %c0_26], %21 {strides = array<i32>} : memref<72x912xf32, #tpu.memory_space<vmem>>, vector<1x912xf32>,
    %c0_27 = arith.constant 0 : index
    %c84 = arith.constant 84 : index
    %23 = vector.load %arg1[%c0_27, %c84] : memref<1x1024xf32, #tpu.memory_space<vmem>>, vector<1x912xf32>
    %c8 = arith.constant 8 : index
    %c0_28 = arith.constant 0 : index
    %24 = vector.load %arg12[%c8, %c0_28] : memref<72x912xf32, #tpu.memory_space<vmem>>, vector<1x912xf32>
    tpu.vector_store %arg12[%c8, %c0_28], %23 {strides = array<i32>} : memref<72x912xf32, #tpu.memory_space<vmem>>, vector<1x912xf32>,
    %c0_29 = arith.constant 0 : index
    %c0_30 = arith.constant 0 : index
    %25 = vector.load %arg12[%c0_29, %c0_30] : memref<72x912xf32, #tpu.memory_space<vmem>>, vector<9x912xf32>
    %c0_31 = arith.constant 0 : index
    %c0_32 = arith.constant 0 : index
    %26 = vector.load %arg3[%c0_31, %c0_32] : memref<8x9xf32, #tpu.memory_space<vmem>>, vector<8x9xf32>
    %cst_33 = arith.constant dense<0.000000e+00> : vector<8x912xf32>
    %27 = tpu.matmul %26, %25, %cst_33 {dimension_numbers = #tpu.dot_dimension_numbers<[1], [0], [0], [1], [0, 0, 1, 1], [], []>} : vector<8x9xf32>, vector<9x912xf32>, vector<8x912xf32> -> vector<8x912xf32>
    %c0_34 = arith.constant 0 : index
    %c0_35 = arith.constant 0 : index
    %28 = vector.load %arg4[%c0_34, %c0_35] : memref<8x1xf32, #tpu.memory_space<vmem>>, vector<8x1xf32>
    %29 = vector.broadcast %28 : vector<8x1xf32> to vector<8x912xf32>
    %30 = arith.addf %27, %29 : vector<8x912xf32>
    %cst_36 = arith.constant 0.000000e+00 : f32
    %31 = vector.broadcast %cst_36 : f32 to vector<8x912xf32>
    %32 = arith.maximumf %30, %31 : vector<8x912xf32>
    %cst_37 = arith.constant 0.000000e+00 : f32
    %33 = vector.shape_cast %2 : vector<1x912xi1> to vector<1x912xi1>
    %34 = vector.broadcast %33 : vector<1x912xi1> to vector<8x912xi1>
    %35 = vector.broadcast %cst_37 : f32 to vector<8x912xf32>
    %36 = arith.select %34, %32, %35 : vector<8x912xi1>, vector<8x912xf32>
    %c0_38 = arith.constant 0 : index
    %c42_39 = arith.constant 42 : index
    %37 = vector.load %arg10[%c0_38, %c42_39] : memref<8x1024xf32, #tpu.memory_space<vmem>>, vector<8x912xf32>
    tpu.vector_store %arg10[%c0_38, %c42_39], %36 {strides = array<i32>} : memref<8x1024xf32, #tpu.memory_space<vmem>>, vector<8x912xf32>,
    %c0_40 = arith.constant 0 : index
    %c0_41 = arith.constant 0 : index
    %38 = vector.load %arg10[%c0_40, %c0_41] : memref<8x1024xf32, #tpu.memory_space<vmem>>, vector<8x912xf32>
    %c0_42 = arith.constant 0 : index
    %c0_43 = arith.constant 0 : index
    %39 = vector.load %arg12[%c0_42, %c0_43] : memref<72x912xf32, #tpu.memory_space<vmem>>, vector<8x912xf32>
    tpu.vector_store %arg12[%c0_42, %c0_43], %38 {strides = array<i32>} : memref<72x912xf32, #tpu.memory_space<vmem>>, vector<8x912xf32>,
    %c0_44 = arith.constant 0 : index
    %c2_45 = arith.constant 2 : index
    %40 = vector.load %arg10[%c0_44, %c2_45] : memref<8x1024xf32, #tpu.memory_space<vmem>>, vector<8x912xf32>
    %c8_46 = arith.constant 8 : index
    %c0_47 = arith.constant 0 : index
    %41 = vector.load %arg12[%c8_46, %c0_47] : memref<72x912xf32, #tpu.memory_space<vmem>>, vector<8x912xf32>
    tpu.vector_store %arg12[%c8_46, %c0_47], %40 {strides = array<i32>} : memref<72x912xf32, #tpu.memory_space<vmem>>, vector<8x912xf32>,
    %c0_48 = arith.constant 0 : index
    %c4_49 = arith.constant 4 : index
    %42 = vector.load %arg10[%c0_48, %c4_49] : memref<8x1024xf32, #tpu.memory_space<vmem>>, vector<8x912xf32>
    %c16 = arith.constant 16 : index
    %c0_50 = arith.constant 0 : index
    %43 = vector.load %arg12[%c16, %c0_50] : memref<72x912xf32, #tpu.memory_space<vmem>>, vector<8x912xf32>
    tpu.vector_store %arg12[%c16, %c0_50], %42 {strides = array<i32>} : memref<72x912xf32, #tpu.memory_space<vmem>>, vector<8x912xf32>,
    %c0_51 = arith.constant 0 : index
    %c40_52 = arith.constant 40 : index
    %44 = vector.load %arg10[%c0_51, %c40_52] : memref<8x1024xf32, #tpu.memory_space<vmem>>, vector<8x912xf32>
    %c24 = arith.constant 24 : index
    %c0_53 = arith.constant 0 : index
    %45 = vector.load %arg12[%c24, %c0_53] : memref<72x912xf32, #tpu.memory_space<vmem>>, vector<8x912xf32>
    tpu.vector_store %arg12[%c24, %c0_53], %44 {strides = array<i32>} : memref<72x912xf32, #tpu.memory_space<vmem>>, vector<8x912xf32>,
    %c0_54 = arith.constant 0 : index
    %c42_55 = arith.constant 42 : index
    %46 = vector.load %arg10[%c0_54, %c42_55] : memref<8x1024xf32, #tpu.memory_space<vmem>>, vector<8x912xf32>
    %c32 = arith.constant 32 : index
    %c0_56 = arith.constant 0 : index
    %47 = vector.load %arg12[%c32, %c0_56] : memref<72x912xf32, #tpu.memory_space<vmem>>, vector<8x912xf32>
    tpu.vector_store %arg12[%c32, %c0_56], %46 {strides = array<i32>} : memref<72x912xf32, #tpu.memory_space<vmem>>, vector<8x912xf32>,
    %c0_57 = arith.constant 0 : index
    %c44_58 = arith.constant 44 : index
    %48 = vector.load %arg10[%c0_57, %c44_58] : memref<8x1024xf32, #tpu.memory_space<vmem>>, vector<8x912xf32>
    %c40_59 = arith.constant 40 : index
    %c0_60 = arith.constant 0 : index
    %49 = vector.load %arg12[%c40_59, %c0_60] : memref<72x912xf32, #tpu.memory_space<vmem>>, vector<8x912xf32>
    tpu.vector_store %arg12[%c40_59, %c0_60], %48 {strides = array<i32>} : memref<72x912xf32, #tpu.memory_space<vmem>>, vector<8x912xf32>,
    %c0_61 = arith.constant 0 : index
    %c80_62 = arith.constant 80 : index
    %50 = vector.load %arg10[%c0_61, %c80_62] : memref<8x1024xf32, #tpu.memory_space<vmem>>, vector<8x912xf32>
    %c48 = arith.constant 48 : index
    %c0_63 = arith.constant 0 : index
    %51 = vector.load %arg12[%c48, %c0_63] : memref<72x912xf32, #tpu.memory_space<vmem>>, vector<8x912xf32>
    tpu.vector_store %arg12[%c48, %c0_63], %50 {strides = array<i32>} : memref<72x912xf32, #tpu.memory_space<vmem>>, vector<8x912xf32>,
    %c0_64 = arith.constant 0 : index
    %c82_65 = arith.constant 82 : index
    %52 = vector.load %arg10[%c0_64, %c82_65] : memref<8x1024xf32, #tpu.memory_space<vmem>>, vector<8x912xf32>
    %c56 = arith.constant 56 : index
    %c0_66 = arith.constant 0 : index
    %53 = vector.load %arg12[%c56, %c0_66] : memref<72x912xf32, #tpu.memory_space<vmem>>, vector<8x912xf32>
    tpu.vector_store %arg12[%c56, %c0_66], %52 {strides = array<i32>} : memref<72x912xf32, #tpu.memory_space<vmem>>, vector<8x912xf32>,
    %c0_67 = arith.constant 0 : index
    %c84_68 = arith.constant 84 : index
    %54 = vector.load %arg10[%c0_67, %c84_68] : memref<8x1024xf32, #tpu.memory_space<vmem>>, vector<8x912xf32>
    %c64 = arith.constant 64 : index
    %c0_69 = arith.constant 0 : index
    %55 = vector.load %arg12[%c64, %c0_69] : memref<72x912xf32, #tpu.memory_space<vmem>>, vector<8x912xf32>
    tpu.vector_store %arg12[%c64, %c0_69], %54 {strides = array<i32>} : memref<72x912xf32, #tpu.memory_space<vmem>>, vector<8x912xf32>,
    %c0_70 = arith.constant 0 : index
    %c0_71 = arith.constant 0 : index
    %56 = vector.load %arg12[%c0_70, %c0_71] : memref<72x912xf32, #tpu.memory_space<vmem>>, vector<72x912xf32>
    %c0_72 = arith.constant 0 : index
    %c0_73 = arith.constant 0 : index
    %57 = vector.load %arg5[%c0_72, %c0_73] : memref<8x72xf32, #tpu.memory_space<vmem>>, vector<8x72xf32>
    %cst_74 = arith.constant dense<0.000000e+00> : vector<8x912xf32>
    %58 = tpu.matmul %57, %56, %cst_74 {dimension_numbers = #tpu.dot_dimension_numbers<[1], [0], [0], [1], [0, 0, 1, 1], [], []>} : vector<8x72xf32>, vector<72x912xf32>, vector<8x912xf32> -> vector<8x912xf32>
    %c0_75 = arith.constant 0 : index
    %c0_76 = arith.constant 0 : index
    %59 = vector.load %arg6[%c0_75, %c0_76] : memref<8x1xf32, #tpu.memory_space<vmem>>, vector<8x1xf32>
    %60 = vector.broadcast %59 : vector<8x1xf32> to vector<8x912xf32>
    %61 = arith.addf %58, %60 : vector<8x912xf32>
    %cst_77 = arith.constant 0.000000e+00 : f32
    %62 = vector.broadcast %cst_77 : f32 to vector<8x912xf32>
    %63 = arith.maximumf %61, %62 : vector<8x912xf32>
    %cst_78 = arith.constant 0.000000e+00 : f32
    %64 = vector.shape_cast %2 : vector<1x912xi1> to vector<1x912xi1>
    %65 = vector.broadcast %64 : vector<1x912xi1> to vector<8x912xi1>
    %66 = vector.broadcast %cst_78 : f32 to vector<8x912xf32>
    %67 = arith.select %65, %63, %66 : vector<8x912xi1>, vector<8x912xf32>
    %c0_79 = arith.constant 0 : index
    %c42_80 = arith.constant 42 : index
    %68 = vector.load %arg11[%c0_79, %c42_80] : memref<8x1024xf32, #tpu.memory_space<vmem>>, vector<8x912xf32>
    tpu.vector_store %arg11[%c0_79, %c42_80], %67 {strides = array<i32>} : memref<8x1024xf32, #tpu.memory_space<vmem>>, vector<8x912xf32>,
    %c0_81 = arith.constant 0 : index
    %c0_82 = arith.constant 0 : index
    %69 = vector.load %arg11[%c0_81, %c0_82] : memref<8x1024xf32, #tpu.memory_space<vmem>>, vector<8x912xf32>
    %c0_83 = arith.constant 0 : index
    %c0_84 = arith.constant 0 : index
    %70 = vector.load %arg12[%c0_83, %c0_84] : memref<72x912xf32, #tpu.memory_space<vmem>>, vector<8x912xf32>
    tpu.vector_store %arg12[%c0_83, %c0_84], %69 {strides = array<i32>} : memref<72x912xf32, #tpu.memory_space<vmem>>, vector<8x912xf32>,
    %c0_85 = arith.constant 0 : index
    %c2_86 = arith.constant 2 : index
    %71 = vector.load %arg11[%c0_85, %c2_86] : memref<8x1024xf32, #tpu.memory_space<vmem>>, vector<8x912xf32>
    %c8_87 = arith.constant 8 : index
    %c0_88 = arith.constant 0 : index
    %72 = vector.load %arg12[%c8_87, %c0_88] : memref<72x912xf32, #tpu.memory_space<vmem>>, vector<8x912xf32>
    tpu.vector_store %arg12[%c8_87, %c0_88], %71 {strides = array<i32>} : memref<72x912xf32, #tpu.memory_space<vmem>>, vector<8x912xf32>,
    %c0_89 = arith.constant 0 : index
    %c4_90 = arith.constant 4 : index
    %73 = vector.load %arg11[%c0_89, %c4_90] : memref<8x1024xf32, #tpu.memory_space<vmem>>, vector<8x912xf32>
    %c16_91 = arith.constant 16 : index
    %c0_92 = arith.constant 0 : index
    %74 = vector.load %arg12[%c16_91, %c0_92] : memref<72x912xf32, #tpu.memory_space<vmem>>, vector<8x912xf32>
    tpu.vector_store %arg12[%c16_91, %c0_92], %73 {strides = array<i32>} : memref<72x912xf32, #tpu.memory_space<vmem>>, vector<8x912xf32>,
    %c0_93 = arith.constant 0 : index
    %c40_94 = arith.constant 40 : index
    %75 = vector.load %arg11[%c0_93, %c40_94] : memref<8x1024xf32, #tpu.memory_space<vmem>>, vector<8x912xf32>
    %c24_95 = arith.constant 24 : index
    %c0_96 = arith.constant 0 : index
    %76 = vector.load %arg12[%c24_95, %c0_96] : memref<72x912xf32, #tpu.memory_space<vmem>>, vector<8x912xf32>
    tpu.vector_store %arg12[%c24_95, %c0_96], %75 {strides = array<i32>} : memref<72x912xf32, #tpu.memory_space<vmem>>, vector<8x912xf32>,
    %c0_97 = arith.constant 0 : index
    %c42_98 = arith.constant 42 : index
    %77 = vector.load %arg11[%c0_97, %c42_98] : memref<8x1024xf32, #tpu.memory_space<vmem>>, vector<8x912xf32>
    %c32_99 = arith.constant 32 : index
    %c0_100 = arith.constant 0 : index
    %78 = vector.load %arg12[%c32_99, %c0_100] : memref<72x912xf32, #tpu.memory_space<vmem>>, vector<8x912xf32>
    tpu.vector_store %arg12[%c32_99, %c0_100], %77 {strides = array<i32>} : memref<72x912xf32, #tpu.memory_space<vmem>>, vector<8x912xf32>,
    %c0_101 = arith.constant 0 : index
    %c44_102 = arith.constant 44 : index
    %79 = vector.load %arg11[%c0_101, %c44_102] : memref<8x1024xf32, #tpu.memory_space<vmem>>, vector<8x912xf32>
    %c40_103 = arith.constant 40 : index
    %c0_104 = arith.constant 0 : index
    %80 = vector.load %arg12[%c40_103, %c0_104] : memref<72x912xf32, #tpu.memory_space<vmem>>, vector<8x912xf32>
    tpu.vector_store %arg12[%c40_103, %c0_104], %79 {strides = array<i32>} : memref<72x912xf32, #tpu.memory_space<vmem>>, vector<8x912xf32>,
    %c0_105 = arith.constant 0 : index
    %c80_106 = arith.constant 80 : index
    %81 = vector.load %arg11[%c0_105, %c80_106] : memref<8x1024xf32, #tpu.memory_space<vmem>>, vector<8x912xf32>
    %c48_107 = arith.constant 48 : index
    %c0_108 = arith.constant 0 : index
    %82 = vector.load %arg12[%c48_107, %c0_108] : memref<72x912xf32, #tpu.memory_space<vmem>>, vector<8x912xf32>
    tpu.vector_store %arg12[%c48_107, %c0_108], %81 {strides = array<i32>} : memref<72x912xf32, #tpu.memory_space<vmem>>, vector<8x912xf32>,
    %c0_109 = arith.constant 0 : index
    %c82_110 = arith.constant 82 : index
    %83 = vector.load %arg11[%c0_109, %c82_110] : memref<8x1024xf32, #tpu.memory_space<vmem>>, vector<8x912xf32>
    %c56_111 = arith.constant 56 : index
    %c0_112 = arith.constant 0 : index
    %84 = vector.load %arg12[%c56_111, %c0_112] : memref<72x912xf32, #tpu.memory_space<vmem>>, vector<8x912xf32>
    tpu.vector_store %arg12[%c56_111, %c0_112], %83 {strides = array<i32>} : memref<72x912xf32, #tpu.memory_space<vmem>>, vector<8x912xf32>,
    %c0_113 = arith.constant 0 : index
    %c84_114 = arith.constant 84 : index
    %85 = vector.load %arg11[%c0_113, %c84_114] : memref<8x1024xf32, #tpu.memory_space<vmem>>, vector<8x912xf32>
    %c64_115 = arith.constant 64 : index
    %c0_116 = arith.constant 0 : index
    %86 = vector.load %arg12[%c64_115, %c0_116] : memref<72x912xf32, #tpu.memory_space<vmem>>, vector<8x912xf32>
    tpu.vector_store %arg12[%c64_115, %c0_116], %85 {strides = array<i32>} : memref<72x912xf32, #tpu.memory_space<vmem>>, vector<8x912xf32>,
    %c0_117 = arith.constant 0 : index
    %c0_118 = arith.constant 0 : index
    %87 = vector.load %arg12[%c0_117, %c0_118] : memref<72x912xf32, #tpu.memory_space<vmem>>, vector<72x912xf32>
    %c0_119 = arith.constant 0 : index
    %c0_120 = arith.constant 0 : index
    %88 = vector.load %arg7[%c0_119, %c0_120] : memref<8x72xf32, #tpu.memory_space<vmem>>, vector<8x72xf32>
    %cst_121 = arith.constant dense<0.000000e+00> : vector<8x912xf32>
    %89 = tpu.matmul %88, %87, %cst_121 {dimension_numbers = #tpu.dot_dimension_numbers<[1], [0], [0], [1], [0, 0, 1, 1], [], []>} : vector<8x72xf32>, vector<72x912xf32>, vector<8x912xf32> -> vector<8x912xf32>
    %c0_122 = arith.constant 0 : index
    %c0_123 = arith.constant 0 : index
    %90 = vector.load %arg8[%c0_122, %c0_123] : memref<8x1xf32, #tpu.memory_space<vmem>>, vector<8x1xf32>
    %91 = vector.broadcast %90 : vector<8x1xf32> to vector<8x912xf32>
    %92 = arith.addf %89, %91 : vector<8x912xf32>
    %93 = arith.negf %92 : vector<8x912xf32>
    %94 = math.exp %93 : vector<8x912xf32>
    %cst_124 = arith.constant 1.000000e+00 : f32
    %95 = vector.broadcast %cst_124 : f32 to vector<8x912xf32>
    %96 = arith.addf %95, %94 : vector<8x912xf32>
    %97 = arith.divf %95, %96 : vector<8x912xf32>
    %cst_125 = arith.constant 0.000000e+00 : f32
    %98 = vector.shape_cast %2 : vector<1x912xi1> to vector<1x912xi1>
    %99 = vector.broadcast %98 : vector<1x912xi1> to vector<8x912xi1>
    %100 = vector.broadcast %cst_125 : f32 to vector<8x912xf32>
    %101 = arith.select %99, %97, %100 : vector<8x912xi1>, vector<8x912xf32>
    %102 = vector.extract_strided_slice %101 {offsets = [0, 0], sizes = [1, 912], strides = [1, 1]} : vector<8x912xf32> to vector<1x912xf32>
    %c0_126 = arith.constant 0 : index
    %c0_127 = arith.constant 0 : index
    %103 = vector.load %arg9[%c0_126, %c0_127] : memref<1x912xf32, #tpu.memory_space<vmem>>, vector<1x912xf32>
    tpu.vector_store %arg9[%c0_126, %c0_127], %102 {strides = array<i32>} : memref<1x912xf32, #tpu.memory_space<vmem>>, vector<1x912xf32>,
    return
  }
  func.func @transform_0(%arg0: i32) -> (i32, i32) {
    %c0_i32 = arith.constant 0 : i32
    %c0_i32_0 = arith.constant 0 : i32
    %c0_i32_1 = arith.constant 0 : i32
    return %c0_i32, %c0_i32_0 : i32, i32
  }
  func.func @transform_1(%arg0: i32) -> (i32, i32) {
    %c0_i32 = arith.constant 0 : i32
    %c0_i32_0 = arith.constant 0 : i32
    %c0_i32_1 = arith.constant 0 : i32
    return %c0_i32, %c0_i32_0 : i32, i32
  }
  func.func @transform_2(%arg0: i32) -> (i32, i32) {
    %c0_i32 = arith.constant 0 : i32
    %c0_i32_0 = arith.constant 0 : i32
    %c0_i32_1 = arith.constant 0 : i32
    return %c0_i32, %c0_i32_0 : i32, i32
  }
  func.func @transform_3(%arg0: i32) -> (i32, i32) {
    %c0_i32 = arith.constant 0 : i32
    %c0_i32_0 = arith.constant 0 : i32
    %c0_i32_1 = arith.constant 0 : i32
    return %c0_i32, %c0_i32_0 : i32, i32
  }
  func.func @transform_4(%arg0: i32) -> (i32, i32) {
    %c0_i32 = arith.constant 0 : i32
    %c0_i32_0 = arith.constant 0 : i32
    %c0_i32_1 = arith.constant 0 : i32
    return %c0_i32, %c0_i32_0 : i32, i32
  }
  func.func @transform_5(%arg0: i32) -> (i32, i32) {
    %c0_i32 = arith.constant 0 : i32
    %c0_i32_0 = arith.constant 0 : i32
    %c0_i32_1 = arith.constant 0 : i32
    return %c0_i32, %c0_i32_0 : i32, i32
  }
  func.func @transform_6(%arg0: i32) -> (i32, i32) {
    %c0_i32 = arith.constant 0 : i32
    %c0_i32_0 = arith.constant 0 : i32
    %c0_i32_1 = arith.constant 0 : i32
    return %c0_i32, %c0_i32_0 : i32, i32
  }
  func.func @transform_7(%arg0: i32) -> (i32, i32) {
    %c0_i32 = arith.constant 0 : i32
    %c0_i32_0 = arith.constant 0 : i32
    %c0_i32_1 = arith.constant 0 : i32
    return %c0_i32, %c0_i32_0 : i32, i32
  }
  func.func @transform_8(%arg0: i32) -> (i32, i32) {
    %c0_i32 = arith.constant 0 : i32
    %c0_i32_0 = arith.constant 0 : i32
    %c0_i32_1 = arith.constant 0 : i32
    return %c0_i32, %c0_i32_0 : i32, i32
  }
}

</mosaic_0001>

<llo_original>
// kernel: addnet_forward.1
$region0: #{addnet_forward.1}
  #allocation0 [shape = 'u32[]', space=smem, size = 0x4, offset = 0x4, fixed_abs, tag = 'smem constant byte address 0x4 - core index']
  #allocation1 [shape = 'u32[72,128]{1,0:T(1,128)}', space=vmem, size = 0x9000, scoped, tag = 'internal scratch']
  #allocation2 [shape = 'f32[8,1024]{1,0:T(8,128)}', space=vmem, size = 0x8000, scoped, tag = 'scratch operand']
  #allocation3 [shape = 'f32[8,1024]{1,0:T(8,128)}', space=vmem, size = 0x8000, scoped, tag = 'scratch operand']
  #allocation4 [shape = 'f32[72,912]{1,0:T(8,128)}', space=vmem, size = 0x48000, scoped, tag = 'scratch operand']
  %s0 = inlined_call_operand.vmem [shape: f32[1,1024], index: 0, kind: input, shape index: {}]
  %s1 = inlined_call_operand.vmem [shape: f32[1,912], index: 1, kind: input, shape index: {}]
  %s2 = inlined_call_operand.vmem [shape: f32[8,9], index: 2, kind: input, shape index: {}]
  %s3 = inlined_call_operand.vmem [shape: f32[8,1], index: 3, kind: input, shape index: {}]
  %s4 = inlined_call_operand.vmem [shape: f32[8,72], index: 4, kind: input, shape index: {}]
  %s5 = inlined_call_operand.vmem [shape: f32[8,1], index: 5, kind: input, shape index: {}]
  %s6 = inlined_call_operand.vmem [shape: f32[8,72], index: 6, kind: input, shape index: {}]
  %s7 = inlined_call_operand.vmem [shape: f32[8,1], index: 7, kind: input, shape index: {}]
  %s8 = inlined_call_operand.vmem [shape: f32[1,912], index: 8, kind: output, shape index: {}]
  %s9 = sld [smem:[#allocation0]]
  $region42: #{addnet_forward.1} parent=0
    _
  %s11 = ssub.s32 1, %s9
  %s12 = scalar_select 0, %s11, %s9
  // Predicated region
  $region2: #{addnet_forward.1} parent=0 // pred_check
    _
  $region3: #{addnet_forward.1} parent=0 // pred_check_branch
    %14 = sbr.rel (0) target = $region5
  $region4: #{addnet_forward.1} parent=0 // pred_region
    _
  $region5: #{addnet_forward.1} parent=0 // pred_fallthru
    _
  // Predicated region
  $region6: #{addnet_forward.1} parent=0 // pred_check
    _
  $region7: #{addnet_forward.1} parent=0 // pred_check_branch
    %16 = sbr.rel (0) target = $region9
  $region8: #{addnet_forward.1} parent=0 // pred_region
    _
  $region9: #{addnet_forward.1} parent=0 // pred_fallthru
    _
  // Predicated region
  $region10: #{addnet_forward.1} parent=0 // pred_check
    _
  $region11: #{addnet_forward.1} parent=0 // pred_check_branch
    %18 = sbr.rel (0) target = $region13
  $region12: #{addnet_forward.1} parent=0 // pred_region
    _
  $region13: #{addnet_forward.1} parent=0 // pred_fallthru
    _
  // Predicated region
  $region14: #{addnet_forward.1} parent=0 // pred_check
    _
  $region15: #{addnet_forward.1} parent=0 // pred_check_branch
    %20 = sbr.rel (0) target = $region17
  $region16: #{addnet_forward.1} parent=0 // pred_region
    _
  $region17: #{addnet_forward.1} parent=0 // pred_fallthru
    _
  // Predicated region
  $region18: #{addnet_forward.1} parent=0 // pred_check
    _
  $region19: #{addnet_forward.1} parent=0 // pred_check_branch
    %22 = sbr.rel (0) target = $region21
  $region20: #{addnet_forward.1} parent=0 // pred_region
    _
  $region21: #{addnet_forward.1} parent=0 // pred_fallthru
    _
  // Predicated region
  $region22: #{addnet_forward.1} parent=0 // pred_check
    _
  $region23: #{addnet_forward.1} parent=0 // pred_check_branch
    %24 = sbr.rel (0) target = $region25
  $region24: #{addnet_forward.1} parent=0 // pred_region
    _
  $region25: #{addnet_forward.1} parent=0 // pred_fallthru
    _
  // Predicated region
  $region26: #{addnet_forward.1} parent=0 // pred_check
    _
  $region27: #{addnet_forward.1} parent=0 // pred_check_branch
    %26 = sbr.rel (0) target = $region29
  $region28: #{addnet_forward.1} parent=0 // pred_region
    _
  $region29: #{addnet_forward.1} parent=0 // pred_fallthru
    _
  // Predicated region
  $region30: #{addnet_forward.1} parent=0 // pred_check
    _
  $region31: #{addnet_forward.1} parent=0 // pred_check_branch
    %28 = sbr.rel (0) target = $region33
  $region32: #{addnet_forward.1} parent=0 // pred_region
    _
  $region33: #{addnet_forward.1} parent=0 // pred_fallthru
    _
  %v29 = vld [vmem:[%s1] sm:$0xff]
  %vm30 = vcmp.gt.f32.partialorder %v29, 0.5
  %31 = vst [vmem:[#allocation2] sm:$0xff] 0.0
  %32 = vst [vmem:[#allocation2 + $0x8] sm:$0xff] 0.0
  %33 = vst [vmem:[#allocation2 + $0x10] sm:$0xff] 0.0
  %34 = vst [vmem:[#allocation2 + $0x18] sm:$0xff] 0.0
  %35 = vst [vmem:[#allocation2 + $0x20] sm:$0xff] 0.0
  %36 = vst [vmem:[#allocation2 + $0x28] sm:$0xff] 0.0
  %37 = vst [vmem:[#allocation2 + $0x30] sm:$0xff] 0.0
  %38 = vst [vmem:[#allocation2 + $0x38] sm:$0xff] 0.0
  %39 = vst [vmem:[#allocation3] sm:$0xff] 0.0
  %40 = vst [vmem:[#allocation3 + $0x8] sm:$0xff] 0.0
  %41 = vst [vmem:[#allocation3 + $0x10] sm:$0xff] 0.0
  %42 = vst [vmem:[#allocation3 + $0x18] sm:$0xff] 0.0
  %43 = vst [vmem:[#allocation3 + $0x20] sm:$0xff] 0.0
  %44 = vst [vmem:[#allocation3 + $0x28] sm:$0xff] 0.0
  %45 = vst [vmem:[#allocation3 + $0x30] sm:$0xff] 0.0
  %46 = vst [vmem:[#allocation3 + $0x38] sm:$0xff] 0.0
  %v47 = vld [vmem:[%s0] sm:$0xff]
  %v48 = vlaneseq
  %vm49 = vcmp.ge.s32.totalorder %v48, 0
  %vm50 = vcmp.lt.s32.totalorder %v48, 912
  %vm51 = vmand %vm49, %vm50
  %52 = vst.msk [vmem:[#allocation4] ss:$8 sm:$0xf] %vm51, %v47
  %53 = vst.msk [vmem:[#allocation4] ss:$8 sm:$0xf0] %vm51, %v47
  %v54 = vld [vmem:[%s0] sm:$0xff]
  %56 = vrot.lane.b32.xlu0 %v54, 126
  %v57 = vpop.permute.xlu0 %56
  %v58 = vrot.slane %v57, 1
  %vm59 = vcmask 1031168
  %v60 = vsel %vm59, %v57, %v58
  %s62 = scalar_lea.vmem [#allocation4], 1
  %63 = vst.msk [vmem:[%s62] ss:$8 sm:$0xf] %vm51, %v60
  %64 = vst.msk [vmem:[%s62] ss:$8 sm:$0xf0] %vm51, %v60
  %v65 = vld [vmem:[%s0] sm:$0xff]
  %67 = vrot.lane.b32.xlu0 %v65, 124
  %v68 = vpop.permute.xlu0 %67
  %v69 = vrot.slane %v68, 1
  %vm70 = vcmask 1014784
  %v71 = vsel %vm70, %v68, %v69
  %s73 = scalar_lea.vmem [#allocation4], 2
  %74 = vst.msk [vmem:[%s73] ss:$8 sm:$0xf] %vm51, %v71
  %75 = vst.msk [vmem:[%s73] ss:$8 sm:$0xf0] %vm51, %v71
  %v76 = vld [vmem:[%s0] sm:$0xff]
  %78 = vrot.lane.b32.xlu0 %v76, 88
  %v79 = vpop.permute.xlu0 %78
  %v80 = vrot.slane %v79, 1
  %vm81 = vcmask 719872
  %v82 = vsel %vm81, %v79, %v80
  %s84 = scalar_lea.vmem [#allocation4], 3
  %85 = vst.msk [vmem:[%s84] ss:$8 sm:$0xf] %vm51, %v82
  %86 = vst.msk [vmem:[%s84] ss:$8 sm:$0xf0] %vm51, %v82
  %v87 = vld [vmem:[%s0] sm:$0xff]
  %89 = vrot.lane.b32.xlu0 %v87, 86
  %v90 = vpop.permute.xlu0 %89
  %v91 = vrot.slane %v90, 1
  %vm92 = vcmask 703488
  %v93 = vsel %vm92, %v90, %v91
  %s95 = scalar_lea.vmem [#allocation4], 4
  %96 = vst.msk [vmem:[%s95] ss:$8 sm:$0xf] %vm51, %v93
  %97 = vst.msk [vmem:[%s95] ss:$8 sm:$0xf0] %vm51, %v93
  %v98 = vld [vmem:[%s0] sm:$0xff]
  %100 = vrot.lane.b32.xlu0 %v98, 84
  %v101 = vpop.permute.xlu0 %100
  %v102 = vrot.slane %v101, 1
  %vm103 = vcmask 687104
  %v104 = vsel %vm103, %v101, %v102
  %s106 = scalar_lea.vmem [#allocation4], 5
  %107 = vst.msk [vmem:[%s106] ss:$8 sm:$0xf] %vm51, %v104
  %108 = vst.msk [vmem:[%s106] ss:$8 sm:$0xf0] %vm51, %v104
  %v109 = vld [vmem:[%s0] sm:$0xff]
  %111 = vrot.lane.b32.xlu0 %v109, 48
  %v112 = vpop.permute.xlu0 %111
  %v113 = vrot.slane %v112, 1
  %vm114 = vcmask 392192
  %v115 = vsel %vm114, %v112, %v113
  %s117 = scalar_lea.vmem [#allocation4], 6
  %118 = vst.msk [vmem:[%s117] ss:$8 sm:$0xf] %vm51, %v115
  %119 = vst.msk [vmem:[%s117] ss:$8 sm:$0xf0] %vm51, %v115
  %v120 = vld [vmem:[%s0] sm:$0xff]
  %122 = vrot.lane.b32.xlu0 %v120, 46
  %v123 = vpop.permute.xlu0 %122
  %v124 = vrot.slane %v123, 1
  %vm125 = vcmask 375808
  %v126 = vsel %vm125, %v123, %v124
  %s128 = scalar_lea.vmem [#allocation4], 7
  %129 = vst.msk [vmem:[%s128] ss:$8 sm:$0xf] %vm51, %v126
  %130 = vst.msk [vmem:[%s128] ss:$8 sm:$0xf0] %vm51, %v126
  %v131 = vld [vmem:[%s0] sm:$0xff]
  %133 = vrot.lane.b32.xlu0 %v131, 44
  %v134 = vpop.permute.xlu0 %133
  %v135 = vrot.slane %v134, 1
  %vm136 = vcmask 359424
  %v137 = vsel %vm136, %v134, %v135
  %s139 = scalar_lea.vmem [#allocation4], 64
  %140 = vst.msk [vmem:[%s139] ss:$8 sm:$0xf] %vm51, %v137
  %141 = vst.msk [vmem:[%s139] ss:$8 sm:$0xf0] %vm51, %v137
  %v142 = vld [vmem:[#allocation4] sm:$0xff]
  %v143 = vld [vmem:[#allocation4 + $0x8] sm:$0xff]
  %v144 = vld [vmem:[#allocation4 + $0x10] sm:$0xff]
  %v145 = vld [vmem:[#allocation4 + $0x18] sm:$0xff]
  %v146 = vld [vmem:[#allocation4 + $0x20] sm:$0xff]
  %v147 = vld [vmem:[#allocation4 + $0x28] sm:$0xff]
  %v148 = vld [vmem:[#allocation4 + $0x30] sm:$0xff]
  %v149 = vld [vmem:[#allocation4 + $0x38] sm:$0xff]
  %v150 = vld [vmem:[#allocation4 + $0x40] sm:$0x1]
  %v151 = vld [vmem:[#allocation4 + $0x48] sm:$0x1]
  %v152 = vld [vmem:[#allocation4 + $0x50] sm:$0x1]
  %v153 = vld [vmem:[#allocation4 + $0x58] sm:$0x1]
  %v154 = vld [vmem:[#allocation4 + $0x60] sm:$0x1]
  %v155 = vld [vmem:[#allocation4 + $0x68] sm:$0x1]
  %v156 = vld [vmem:[#allocation4 + $0x70] sm:$0x1]
  %v157 = vld [vmem:[#allocation4 + $0x78] sm:$0x1]
  %v158 = vld [vmem:[%s2] sm:$0xff]
  %v159 = vld [vmem:[%s3] sm:$0xff]
  %161 = vset.pattern.permute.xlu0 0
  %162 = vperm.xlu0 %161, %v159
  %v163 = vpop.permute.xlu0 %162
  %vm165 = vcmask 72704
  %v167 = vsel %vm165, %v158, 0
  %vm169 = vcmask 1040384
  %v171 = vsel %vm169, %v150, 0
  %v174 = vsel %vm169, %v151, 0
  %v177 = vsel %vm169, %v152, 0
  %v180 = vsel %vm169, %v153, 0
  %v183 = vsel %vm169, %v154, 0
  %v186 = vsel %vm169, %v155, 0
  %v189 = vsel %vm169, %v156, 0
  %v192 = vsel %vm169, %v157, 0
  %194 = vmatpush.msra.mxu0 0.0
  %195 = vmatpush.msra.mxu0 0.0
  %196 = vmatpush.msra.mxu0 0.0
  %197 = vmatpush.msra.mxu0 0.0
  %198 = vmatpush.msra.mxu0 0.0
  %199 = vmatpush.msra.mxu0 0.0
  %200 = vmatpush.msra.mxu0 0.0
  %201 = vmatpush.msra.mxu0 0.0
  %202 = vmatpush.msra.mxu0 0.0
  %203 = vmatpush.msra.mxu0 0.0
  %204 = vmatpush.msra.mxu0 0.0
  %205 = vmatpush.msra.mxu0 0.0
  %206 = vmatpush.msra.mxu0 0.0
  %207 = vmatpush.msra.mxu0 0.0
  %208 = vmatpush.msra.mxu0 %v171
  %209 = vmatpush.msra.mxu0 %v142
  %210 = vmatmul.f32.gmra.mxu0 %v167
  %v211 = vpop.f32.mrf.mxu0
  %v212 = vadd.f32 %v163, %v211
  %213 = vdwg.mxu0
  %214 = vmatpush.msra.mxu0 0.0
  %215 = vmatpush.msra.mxu0 0.0
  %216 = vmatpush.msra.mxu0 0.0
  %217 = vmatpush.msra.mxu0 0.0
  %218 = vmatpush.msra.mxu0 0.0
  %219 = vmatpush.msra.mxu0 0.0
  %220 = vmatpush.msra.mxu0 0.0
  %221 = vmatpush.msra.mxu0 0.0
  %222 = vmatpush.msra.mxu0 0.0
  %223 = vmatpush.msra.mxu0 0.0
  %224 = vmatpush.msra.mxu0 0.0
  %225 = vmatpush.msra.mxu0 0.0
  %226 = vmatpush.msra.mxu0 0.0
  %227 = vmatpush.msra.mxu0 0.0
  %228 = vmatpush.msra.mxu0 %v174
  %229 = vmatpush.msra.mxu0 %v143
  %230 = vmatmul.f32.gmra.mxu0 %v167
  %v231 = vpop.f32.mrf.mxu0
  %v232 = vadd.f32 %v163, %v231
  %233 = vdwg.mxu0
  %234 = vmatpush.msra.mxu0 0.0
  %235 = vmatpush.msra.mxu0 0.0
  %236 = vmatpush.msra.mxu0 0.0
  %237 = vmatpush.msra.mxu0 0.0
  %238 = vmatpush.msra.mxu0 0.0
  %239 = vmatpush.msra.mxu0 0.0
  %240 = vmatpush.msra.mxu0 0.0
  %241 = vmatpush.msra.mxu0 0.0
  %242 = vmatpush.msra.mxu0 0.0
  %243 = vmatpush.msra.mxu0 0.0
  %244 = vmatpush.msra.mxu0 0.0
  %245 = vmatpush.msra.mxu0 0.0
  %246 = vmatpush.msra.mxu0 0.0
  %247 = vmatpush.msra.mxu0 0.0
  %248 = vmatpush.msra.mxu0 %v177
  %249 = vmatpush.msra.mxu0 %v144
  %250 = vmatmul.f32.gmra.mxu0 %v167
  %v251 = vpop.f32.mrf.mxu0
  %v252 = vadd.f32 %v163, %v251
  %253 = vdwg.mxu0
  %254 = vmatpush.msra.mxu0 0.0
  %255 = vmatpush.msra.mxu0 0.0
  %256 = vmatpush.msra.mxu0 0.0
  %257 = vmatpush.msra.mxu0 0.0
  %258 = vmatpush.msra.mxu0 0.0
  %259 = vmatpush.msra.mxu0 0.0
  %260 = vmatpush.msra.mxu0 0.0
  %261 = vmatpush.msra.mxu0 0.0
  %262 = vmatpush.msra.mxu0 0.0
  %263 = vmatpush.msra.mxu0 0.0
  %264 = vmatpush.msra.mxu0 0.0
  %265 = vmatpush.msra.mxu0 0.0
  %266 = vmatpush.msra.mxu0 0.0
  %267 = vmatpush.msra.mxu0 0.0
  %268 = vmatpush.msra.mxu0 %v180
  %269 = vmatpush.msra.mxu0 %v145
  %270 = vmatmul.f32.gmra.mxu0 %v167
  %v271 = vpop.f32.mrf.mxu0
  %v272 = vadd.f32 %v163, %v271
  %273 = vdwg.mxu0
  %274 = vmatpush.msra.mxu0 0.0
  %275 = vmatpush.msra.mxu0 0.0
  %276 = vmatpush.msra.mxu0 0.0
  %277 = vmatpush.msra.mxu0 0.0
  %278 = vmatpush.msra.mxu0 0.0
  %279 = vmatpush.msra.mxu0 0.0
  %280 = vmatpush.msra.mxu0 0.0
  %281 = vmatpush.msra.mxu0 0.0
  %282 = vmatpush.msra.mxu0 0.0
  %283 = vmatpush.msra.mxu0 0.0
  %284 = vmatpush.msra.mxu0 0.0
  %285 = vmatpush.msra.mxu0 0.0
  %286 = vmatpush.msra.mxu0 0.0
  %287 = vmatpush.msra.mxu0 0.0
  %288 = vmatpush.msra.mxu0 %v183
  %289 = vmatpush.msra.mxu0 %v146
  %290 = vmatmul.f32.gmra.mxu0 %v167
  %v291 = vpop.f32.mrf.mxu0
  %v292 = vadd.f32 %v163, %v291
  %293 = vdwg.mxu0
  %294 = vmatpush.msra.mxu0 0.0
  %295 = vmatpush.msra.mxu0 0.0
  %296 = vmatpush.msra.mxu0 0.0
  %297 = vmatpush.msra.mxu0 0.0
  %298 = vmatpush.msra.mxu0 0.0
  %299 = vmatpush.msra.mxu0 0.0
  %300 = vmatpush.msra.mxu0 0.0
  %301 = vmatpush.msra.mxu0 0.0
  %302 = vmatpush.msra.mxu0 0.0
  %303 = vmatpush.msra.mxu0 0.0
  %304 = vmatpush.msra.mxu0 0.0
  %305 = vmatpush.msra.mxu0 0.0
  %306 = vmatpush.msra.mxu0 0.0
  %307 = vmatpush.msra.mxu0 0.0
  %308 = vmatpush.msra.mxu0 %v186
  %309 = vmatpush.msra.mxu0 %v147
  %310 = vmatmul.f32.gmra.mxu0 %v167
  %v311 = vpop.f32.mrf.mxu0
  %v312 = vadd.f32 %v163, %v311
  %313 = vdwg.mxu0
  %314 = vmatpush.msra.mxu0 0.0
  %315 = vmatpush.msra.mxu0 0.0
  %316 = vmatpush.msra.mxu0 0.0
  %317 = vmatpush.msra.mxu0 0.0
  %318 = vmatpush.msra.mxu0 0.0
  %319 = vmatpush.msra.mxu0 0.0
  %320 = vmatpush.msra.mxu0 0.0
  %321 = vmatpush.msra.mxu0 0.0
  %322 = vmatpush.msra.mxu0 0.0
  %323 = vmatpush.msra.mxu0 0.0
  %324 = vmatpush.msra.mxu0 0.0
  %325 = vmatpush.msra.mxu0 0.0
  %326 = vmatpush.msra.mxu0 0.0
  %327 = vmatpush.msra.mxu0 0.0
  %328 = vmatpush.msra.mxu0 %v189
  %329 = vmatpush.msra.mxu0 %v148
  %330 = vmatmul.f32.gmra.mxu0 %v167
  %v331 = vpop.f32.mrf.mxu0
  %v332 = vadd.f32 %v163, %v331
  %333 = vdwg.mxu0
  %334 = vmatpush.msra.mxu0 0.0
  %335 = vmatpush.msra.mxu0 0.0
  %336 = vmatpush.msra.mxu0 0.0
  %337 = vmatpush.msra.mxu0 0.0
  %338 = vmatpush.msra.mxu0 0.0
  %339 = vmatpush.msra.mxu0 0.0
  %340 = vmatpush.msra.mxu0 0.0
  %341 = vmatpush.msra.mxu0 0.0
  %342 = vmatpush.msra.mxu0 0.0
  %343 = vmatpush.msra.mxu0 0.0
  %344 = vmatpush.msra.mxu0 0.0
  %345 = vmatpush.msra.mxu0 0.0
  %346 = vmatpush.msra.mxu0 0.0
  %347 = vmatpush.msra.mxu0 0.0
  %348 = vmatpush.msra.mxu0 %v192
  %349 = vmatpush.msra.mxu0 %v149
  %350 = vmatmul.f32.gmra.mxu0 %v167
  %v351 = vpop.f32.mrf.mxu0
  %v352 = vadd.f32 %v163, %v351
  %353 = vdwg.mxu0
  %v354 = vmax.f32 %v212, 0.0
  %v355 = vmax.f32 %v232, 0.0
  %v356 = vmax.f32 %v252, 0.0
  %v357 = vmax.f32 %v272, 0.0
  %v358 = vmax.f32 %v292, 0.0
  %v359 = vmax.f32 %v312, 0.0
  %v360 = vmax.f32 %v332, 0.0
  %v361 = vmax.f32 %v352, 0.0
  %v362 = vsel %vm30, 1, 0
  %v363 = vperm.slane %v362, 0
  %v364 = vperm.slane %v362, 1
  %v365 = vperm.slane %v362, 2
  %v366 = vperm.slane %v362, 3
  %v367 = vperm.slane %v362, 4
  %v368 = vperm.slane %v362, 5
  %v369 = vperm.slane %v362, 6
  %v370 = vperm.slane %v362, 7
  %vm371 = vcmp.eq.s32.totalorder %v363, 1
  %vm372 = vcmp.eq.s32.totalorder %v364, 1
  %vm373 = vcmp.eq.s32.totalorder %v365, 1
  %vm374 = vcmp.eq.s32.totalorder %v366, 1
  %vm375 = vcmp.eq.s32.totalorder %v367, 1
  %vm376 = vcmp.eq.s32.totalorder %v368, 1
  %vm377 = vcmp.eq.s32.totalorder %v369, 1
  %vm378 = vcmp.eq.s32.totalorder %v370, 1
  %v379 = vsel %vm371, %v354, 0.0
  %v380 = vsel %vm372, %v355, 0.0
  %v381 = vsel %vm373, %v356, 0.0
  %v382 = vsel %vm374, %v357, 0.0
  %v383 = vsel %vm375, %v358, 0.0
  %v384 = vsel %vm376, %v359, 0.0
  %v385 = vsel %vm377, %v360, 0.0
  %v386 = vsel %vm378, %v361, 0.0
  %395 = vrot.lane.b32.xlu0 %v379, 42
  %v396 = vpop.permute.xlu0 %395
  %397 = vrot.lane.b32.xlu0 %v380, 42
  %v398 = vpop.permute.xlu0 %397
  %399 = vrot.lane.b32.xlu0 %v381, 42
  %v400 = vpop.permute.xlu0 %399
  %401 = vrot.lane.b32.xlu0 %v382, 42
  %v402 = vpop.permute.xlu0 %401
  %403 = vrot.lane.b32.xlu0 %v383, 42
  %v404 = vpop.permute.xlu0 %403
  %405 = vrot.lane.b32.xlu0 %v384, 42
  %v406 = vpop.permute.xlu0 %405
  %407 = vrot.lane.b32.xlu0 %v385, 42
  %v408 = vpop.permute.xlu0 %407
  %409 = vrot.lane.b32.xlu0 %v386, 42
  %v410 = vpop.permute.xlu0 %409
  %vm411 = vcmask 343040
  %v412 = vsel %vm411, %v396, %v398
  %v413 = vsel %vm411, %v398, %v400
  %v414 = vsel %vm411, %v400, %v402
  %v415 = vsel %vm411, %v402, %v404
  %v416 = vsel %vm411, %v404, %v406
  %v417 = vsel %vm411, %v406, %v408
  %v418 = vsel %vm411, %v408, %v410
  %vm427 = vcmask 1047888
  %428 = vst.msk [vmem:[#allocation2] sm:$0xff] %vm427, %v396
  %429 = vst [vmem:[#allocation2 + $0x8] sm:$0xff] %v412
  %430 = vst [vmem:[#allocation2 + $0x10] sm:$0xff] %v413
  %431 = vst [vmem:[#allocation2 + $0x18] sm:$0xff] %v414
  %432 = vst [vmem:[#allocation2 + $0x20] sm:$0xff] %v415
  %433 = vst [vmem:[#allocation2 + $0x28] sm:$0xff] %v416
  %434 = vst [vmem:[#allocation2 + $0x30] sm:$0xff] %v417
  %vm435 = vcmask 474112
  %436 = vst.msk [vmem:[#allocation2 + $0x38] sm:$0xff] %vm435, %v418
  %v437 = vld [vmem:[#allocation2] sm:$0xff]
  %v438 = vld [vmem:[#allocation2 + $0x8] sm:$0xff]
  %v439 = vld [vmem:[#allocation2 + $0x10] sm:$0xff]
  %v440 = vld [vmem:[#allocation2 + $0x18] sm:$0xff]
  %v441 = vld [vmem:[#allocation2 + $0x20] sm:$0xff]
  %v442 = vld [vmem:[#allocation2 + $0x28] sm:$0xff]
  %v443 = vld [vmem:[#allocation2 + $0x30] sm:$0xff]
  %v444 = vld [vmem:[#allocation2 + $0x38] sm:$0xff]
  %445 = vst [vmem:[#allocation4] sm:$0xff] %v437
  %446 = vst [vmem:[#allocation4 + $0x8] sm:$0xff] %v438
  %447 = vst [vmem:[#allocation4 + $0x10] sm:$0xff] %v439
  %448 = vst [vmem:[#allocation4 + $0x18] sm:$0xff] %v440
  %449 = vst [vmem:[#allocation4 + $0x20] sm:$0xff] %v441
  %450 = vst [vmem:[#allocation4 + $0x28] sm:$0xff] %v442
  %451 = vst [vmem:[#allocation4 + $0x30] sm:$0xff] %v443
  %vm452 = vcmask 130048
  %453 = vst.msk [vmem:[#allocation4 + $0x38] sm:$0xff] %vm452, %v444
  %v454 = vld [vmem:[#allocation2] sm:$0xff]
  %v455 = vld [vmem:[#allocation2 + $0x8] sm:$0xff]
  %v456 = vld [vmem:[#allocation2 + $0x10] sm:$0xff]
  %v457 = vld [vmem:[#allocation2 + $0x18] sm:$0xff]
  %v458 = vld [vmem:[#allocation2 + $0x20] sm:$0xff]
  %v459 = vld [vmem:[#allocation2 + $0x28] sm:$0xff]
  %v460 = vld [vmem:[#allocation2 + $0x30] sm:$0xff]
  %v461 = vld [vmem:[#allocation2 + $0x38] sm:$0xff]
  %470 = vrot.lane.b32.xlu0 %v454, 126
  %v471 = vpop.permute.xlu0 %470
  %472 = vrot.lane.b32.xlu0 %v455, 126
  %v473 = vpop.permute.xlu0 %472
  %474 = vrot.lane.b32.xlu0 %v456, 126
  %v475 = vpop.permute.xlu0 %474
  %476 = vrot.lane.b32.xlu0 %v457, 126
  %v477 = vpop.permute.xlu0 %476
  %478 = vrot.lane.b32.xlu0 %v458, 126
  %v479 = vpop.permute.xlu0 %478
  %480 = vrot.lane.b32.xlu0 %v459, 126
  %v481 = vpop.permute.xlu0 %480
  %482 = vrot.lane.b32.xlu0 %v460, 126
  %v483 = vpop.permute.xlu0 %482
  %484 = vrot.lane.b32.xlu0 %v461, 126
  %v485 = vpop.permute.xlu0 %484
  %v486 = vsel %vm59, %v471, %v473
  %v487 = vsel %vm59, %v473, %v475
  %v488 = vsel %vm59, %v475, %v477
  %v489 = vsel %vm59, %v477, %v479
  %v490 = vsel %vm59, %v479, %v481
  %v491 = vsel %vm59, %v481, %v483
  %v492 = vsel %vm59, %v483, %v485
  %501 = vst [vmem:[#allocation4 + $0x40] sm:$0xff] %v486
  %502 = vst [vmem:[#allocation4 + $0x48] sm:$0xff] %v487
  %503 = vst [vmem:[#allocation4 + $0x50] sm:$0xff] %v488
  %504 = vst [vmem:[#allocation4 + $0x58] sm:$0xff] %v489
  %505 = vst [vmem:[#allocation4 + $0x60] sm:$0xff] %v490
  %506 = vst [vmem:[#allocation4 + $0x68] sm:$0xff] %v491
  %507 = vst [vmem:[#allocation4 + $0x70] sm:$0xff] %v492
  %508 = vst.msk [vmem:[#allocation4 + $0x78] sm:$0xff] %vm452, %v485
  %v509 = vld [vmem:[#allocation2] sm:$0xff]
  %v510 = vld [vmem:[#allocation2 + $0x8] sm:$0xff]
  %v511 = vld [vmem:[#allocation2 + $0x10] sm:$0xff]
  %v512 = vld [vmem:[#allocation2 + $0x18] sm:$0xff]
  %v513 = vld [vmem:[#allocation2 + $0x20] sm:$0xff]
  %v514 = vld [vmem:[#allocation2 + $0x28] sm:$0xff]
  %v515 = vld [vmem:[#allocation2 + $0x30] sm:$0xff]
  %v516 = vld [vmem:[#allocation2 + $0x38] sm:$0xff]
  %525 = vrot.lane.b32.xlu0 %v509, 124
  %v526 = vpop.permute.xlu0 %525
  %527 = vrot.lane.b32.xlu0 %v510, 124
  %v528 = vpop.permute.xlu0 %527
  %529 = vrot.lane.b32.xlu0 %v511, 124
  %v530 = vpop.permute.xlu0 %529
  %531 = vrot.lane.b32.xlu0 %v512, 124
  %v532 = vpop.permute.xlu0 %531
  %533 = vrot.lane.b32.xlu0 %v513, 124
  %v534 = vpop.permute.xlu0 %533
  %535 = vrot.lane.b32.xlu0 %v514, 124
  %v536 = vpop.permute.xlu0 %535
  %537 = vrot.lane.b32.xlu0 %v515, 124
  %v538 = vpop.permute.xlu0 %537
  %539 = vrot.lane.b32.xlu0 %v516, 124
  %v540 = vpop.permute.xlu0 %539
  %v541 = vsel %vm70, %v526, %v528
  %v542 = vsel %vm70, %v528, %v530
  %v543 = vsel %vm70, %v530, %v532
  %v544 = vsel %vm70, %v532, %v534
  %v545 = vsel %vm70, %v534, %v536
  %v546 = vsel %vm70, %v536, %v538
  %v547 = vsel %vm70, %v538, %v540
  %556 = vst [vmem:[#allocation4 + $0x80] sm:$0xff] %v541
  %557 = vst [vmem:[#allocation4 + $0x88] sm:$0xff] %v542
  %558 = vst [vmem:[#allocation4 + $0x90] sm:$0xff] %v543
  %559 = vst [vmem:[#allocation4 + $0x98] sm:$0xff] %v544
  %560 = vst [vmem:[#allocation4 + $0xa0] sm:$0xff] %v545
  %561 = vst [vmem:[#allocation4 + $0xa8] sm:$0xff] %v546
  %562 = vst [vmem:[#allocation4 + $0xb0] sm:$0xff] %v547
  %563 = vst.msk [vmem:[#allocation4 + $0xb8] sm:$0xff] %vm452, %v540
  %v564 = vld [vmem:[#allocation2] sm:$0xff]
  %v565 = vld [vmem:[#allocation2 + $0x8] sm:$0xff]
  %v566 = vld [vmem:[#allocation2 + $0x10] sm:$0xff]
  %v567 = vld [vmem:[#allocation2 + $0x18] sm:$0xff]
  %v568 = vld [vmem:[#allocation2 + $0x20] sm:$0xff]
  %v569 = vld [vmem:[#allocation2 + $0x28] sm:$0xff]
  %v570 = vld [vmem:[#allocation2 + $0x30] sm:$0xff]
  %v571 = vld [vmem:[#allocation2 + $0x38] sm:$0xff]
  %580 = vrot.lane.b32.xlu0 %v564, 88
  %v581 = vpop.permute.xlu0 %580
  %582 = vrot.lane.b32.xlu0 %v565, 88
  %v583 = vpop.permute.xlu0 %582
  %584 = vrot.lane.b32.xlu0 %v566, 88
  %v585 = vpop.permute.xlu0 %584
  %586 = vrot.lane.b32.xlu0 %v567, 88
  %v587 = vpop.permute.xlu0 %586
  %588 = vrot.lane.b32.xlu0 %v568, 88
  %v589 = vpop.permute.xlu0 %588
  %590 = vrot.lane.b32.xlu0 %v569, 88
  %v591 = vpop.permute.xlu0 %590
  %592 = vrot.lane.b32.xlu0 %v570, 88
  %v593 = vpop.permute.xlu0 %592
  %594 = vrot.lane.b32.xlu0 %v571, 88
  %v595 = vpop.permute.xlu0 %594
  %v596 = vsel %vm81, %v581, %v583
  %v597 = vsel %vm81, %v583, %v585
  %v598 = vsel %vm81, %v585, %v587
  %v599 = vsel %vm81, %v587, %v589
  %v600 = vsel %vm81, %v589, %v591
  %v601 = vsel %vm81, %v591, %v593
  %v602 = vsel %vm81, %v593, %v595
  %611 = vst [vmem:[#allocation4 + $0xc0] sm:$0xff] %v596
  %612 = vst [vmem:[#allocation4 + $0xc8] sm:$0xff] %v597
  %613 = vst [vmem:[#allocation4 + $0xd0] sm:$0xff] %v598
  %614 = vst [vmem:[#allocation4 + $0xd8] sm:$0xff] %v599
  %615 = vst [vmem:[#allocation4 + $0xe0] sm:$0xff] %v600
  %616 = vst [vmem:[#allocation4 + $0xe8] sm:$0xff] %v601
  %617 = vst [vmem:[#allocation4 + $0xf0] sm:$0xff] %v602
  %618 = vst.msk [vmem:[#allocation4 + $0xf8] sm:$0xff] %vm452, %v595
  %v619 = vld [vmem:[#allocation2] sm:$0xff]
  %v620 = vld [vmem:[#allocation2 + $0x8] sm:$0xff]
  %v621 = vld [vmem:[#allocation2 + $0x10] sm:$0xff]
  %v622 = vld [vmem:[#allocation2 + $0x18] sm:$0xff]
  %v623 = vld [vmem:[#allocation2 + $0x20] sm:$0xff]
  %v624 = vld [vmem:[#allocation2 + $0x28] sm:$0xff]
  %v625 = vld [vmem:[#allocation2 + $0x30] sm:$0xff]
  %v626 = vld [vmem:[#allocation2 + $0x38] sm:$0xff]
  %635 = vrot.lane.b32.xlu0 %v619, 86
  %v636 = vpop.permute.xlu0 %635
  %637 = vrot.lane.b32.xlu0 %v620, 86
  %v638 = vpop.permute.xlu0 %637
  %639 = vrot.lane.b32.xlu0 %v621, 86
  %v640 = vpop.permute.xlu0 %639
  %641 = vrot.lane.b32.xlu0 %v622, 86
  %v642 = vpop.permute.xlu0 %641
  %643 = vrot.lane.b32.xlu0 %v623, 86
  %v644 = vpop.permute.xlu0 %643
  %645 = vrot.lane.b32.xlu0 %v624, 86
  %v646 = vpop.permute.xlu0 %645
  %647 = vrot.lane.b32.xlu0 %v625, 86
  %v648 = vpop.permute.xlu0 %647
  %649 = vrot.lane.b32.xlu0 %v626, 86
  %v650 = vpop.permute.xlu0 %649
  %v651 = vsel %vm92, %v636, %v638
  %v652 = vsel %vm92, %v638, %v640
  %v653 = vsel %vm92, %v640, %v642
  %v654 = vsel %vm92, %v642, %v644
  %v655 = vsel %vm92, %v644, %v646
  %v656 = vsel %vm92, %v646, %v648
  %v657 = vsel %vm92, %v648, %v650
  %666 = vst [vmem:[#allocation4 + $0x100] sm:$0xff] %v651
  %667 = vst [vmem:[#allocation4 + $0x108] sm:$0xff] %v652
  %668 = vst [vmem:[#allocation4 + $0x110] sm:$0xff] %v653
  %669 = vst [vmem:[#allocation4 + $0x118] sm:$0xff] %v654
  %670 = vst [vmem:[#allocation4 + $0x120] sm:$0xff] %v655
  %671 = vst [vmem:[#allocation4 + $0x128] sm:$0xff] %v656
  %672 = vst [vmem:[#allocation4 + $0x130] sm:$0xff] %v657
  %673 = vst.msk [vmem:[#allocation4 + $0x138] sm:$0xff] %vm452, %v650
  %v674 = vld [vmem:[#allocation2] sm:$0xff]
  %v675 = vld [vmem:[#allocation2 + $0x8] sm:$0xff]
  %v676 = vld [vmem:[#allocation2 + $0x10] sm:$0xff]
  %v677 = vld [vmem:[#allocation2 + $0x18] sm:$0xff]
  %v678 = vld [vmem:[#allocation2 + $0x20] sm:$0xff]
  %v679 = vld [vmem:[#allocation2 + $0x28] sm:$0xff]
  %v680 = vld [vmem:[#allocation2 + $0x30] sm:$0xff]
  %v681 = vld [vmem:[#allocation2 + $0x38] sm:$0xff]
  %690 = vrot.lane.b32.xlu0 %v674, 84
  %v691 = vpop.permute.xlu0 %690
  %692 = vrot.lane.b32.xlu0 %v675, 84
  %v693 = vpop.permute.xlu0 %692
  %694 = vrot.lane.b32.xlu0 %v676, 84
  %v695 = vpop.permute.xlu0 %694
  %696 = vrot.lane.b32.xlu0 %v677, 84
  %v697 = vpop.permute.xlu0 %696
  %698 = vrot.lane.b32.xlu0 %v678, 84
  %v699 = vpop.permute.xlu0 %698
  %700 = vrot.lane.b32.xlu0 %v679, 84
  %v701 = vpop.permute.xlu0 %700
  %702 = vrot.lane.b32.xlu0 %v680, 84
  %v703 = vpop.permute.xlu0 %702
  %704 = vrot.lane.b32.xlu0 %v681, 84
  %v705 = vpop.permute.xlu0 %704
  %v706 = vsel %vm103, %v691, %v693
  %v707 = vsel %vm103, %v693, %v695
  %v708 = vsel %vm103, %v695, %v697
  %v709 = vsel %vm103, %v697, %v699
  %v710 = vsel %vm103, %v699, %v701
  %v711 = vsel %vm103, %v701, %v703
  %v712 = vsel %vm103, %v703, %v705
  %721 = vst [vmem:[#allocation4 + $0x140] sm:$0xff] %v706
  %722 = vst [vmem:[#allocation4 + $0x148] sm:$0xff] %v707
  %723 = vst [vmem:[#allocation4 + $0x150] sm:$0xff] %v708
  %724 = vst [vmem:[#allocation4 + $0x158] sm:$0xff] %v709
  %725 = vst [vmem:[#allocation4 + $0x160] sm:$0xff] %v710
  %726 = vst [vmem:[#allocation4 + $0x168] sm:$0xff] %v711
  %727 = vst [vmem:[#allocation4 + $0x170] sm:$0xff] %v712
  %728 = vst.msk [vmem:[#allocation4 + $0x178] sm:$0xff] %vm452, %v705
  %v729 = vld [vmem:[#allocation2] sm:$0xff]
  %v730 = vld [vmem:[#allocation2 + $0x8] sm:$0xff]
  %v731 = vld [vmem:[#allocation2 + $0x10] sm:$0xff]
  %v732 = vld [vmem:[#allocation2 + $0x18] sm:$0xff]
  %v733 = vld [vmem:[#allocation2 + $0x20] sm:$0xff]
  %v734 = vld [vmem:[#allocation2 + $0x28] sm:$0xff]
  %v735 = vld [vmem:[#allocation2 + $0x30] sm:$0xff]
  %v736 = vld [vmem:[#allocation2 + $0x38] sm:$0xff]
  %745 = vrot.lane.b32.xlu0 %v729, 48
  %v746 = vpop.permute.xlu0 %745
  %747 = vrot.lane.b32.xlu0 %v730, 48
  %v748 = vpop.permute.xlu0 %747
  %749 = vrot.lane.b32.xlu0 %v731, 48
  %v750 = vpop.permute.xlu0 %749
  %751 = vrot.lane.b32.xlu0 %v732, 48
  %v752 = vpop.permute.xlu0 %751
  %753 = vrot.lane.b32.xlu0 %v733, 48
  %v754 = vpop.permute.xlu0 %753
  %755 = vrot.lane.b32.xlu0 %v734, 48
  %v756 = vpop.permute.xlu0 %755
  %757 = vrot.lane.b32.xlu0 %v735, 48
  %v758 = vpop.permute.xlu0 %757
  %759 = vrot.lane.b32.xlu0 %v736, 48
  %v760 = vpop.permute.xlu0 %759
  %v761 = vsel %vm114, %v746, %v748
  %v762 = vsel %vm114, %v748, %v750
  %v763 = vsel %vm114, %v750, %v752
  %v764 = vsel %vm114, %v752, %v754
  %v765 = vsel %vm114, %v754, %v756
  %v766 = vsel %vm114, %v756, %v758
  %v767 = vsel %vm114, %v758, %v760
  %776 = vst [vmem:[#allocation4 + $0x180] sm:$0xff] %v761
  %777 = vst [vmem:[#allocation4 + $0x188] sm:$0xff] %v762
  %778 = vst [vmem:[#allocation4 + $0x190] sm:$0xff] %v763
  %779 = vst [vmem:[#allocation4 + $0x198] sm:$0xff] %v764
  %780 = vst [vmem:[#allocation4 + $0x1a0] sm:$0xff] %v765
  %781 = vst [vmem:[#allocation4 + $0x1a8] sm:$0xff] %v766
  %782 = vst [vmem:[#allocation4 + $0x1b0] sm:$0xff] %v767
  %783 = vst.msk [vmem:[#allocation4 + $0x1b8] sm:$0xff] %vm452, %v760
  %v784 = vld [vmem:[#allocation2] sm:$0xff]
  %v785 = vld [vmem:[#allocation2 + $0x8] sm:$0xff]
  %v786 = vld [vmem:[#allocation2 + $0x10] sm:$0xff]
  %v787 = vld [vmem:[#allocation2 + $0x18] sm:$0xff]
  %v788 = vld [vmem:[#allocation2 + $0x20] sm:$0xff]
  %v789 = vld [vmem:[#allocation2 + $0x28] sm:$0xff]
  %v790 = vld [vmem:[#allocation2 + $0x30] sm:$0xff]
  %v791 = vld [vmem:[#allocation2 + $0x38] sm:$0xff]
  %800 = vrot.lane.b32.xlu0 %v784, 46
  %v801 = vpop.permute.xlu0 %800
  %802 = vrot.lane.b32.xlu0 %v785, 46
  %v803 = vpop.permute.xlu0 %802
  %804 = vrot.lane.b32.xlu0 %v786, 46
  %v805 = vpop.permute.xlu0 %804
  %806 = vrot.lane.b32.xlu0 %v787, 46
  %v807 = vpop.permute.xlu0 %806
  %808 = vrot.lane.b32.xlu0 %v788, 46
  %v809 = vpop.permute.xlu0 %808
  %810 = vrot.lane.b32.xlu0 %v789, 46
  %v811 = vpop.permute.xlu0 %810
  %812 = vrot.lane.b32.xlu0 %v790, 46
  %v813 = vpop.permute.xlu0 %812
  %814 = vrot.lane.b32.xlu0 %v791, 46
  %v815 = vpop.permute.xlu0 %814
  %v816 = vsel %vm125, %v801, %v803
  %v817 = vsel %vm125, %v803, %v805
  %v818 = vsel %vm125, %v805, %v807
  %v819 = vsel %vm125, %v807, %v809
  %v820 = vsel %vm125, %v809, %v811
  %v821 = vsel %vm125, %v811, %v813
  %v822 = vsel %vm125, %v813, %v815
  %831 = vst [vmem:[#allocation4 + $0x1c0] sm:$0xff] %v816
  %832 = vst [vmem:[#allocation4 + $0x1c8] sm:$0xff] %v817
  %833 = vst [vmem:[#allocation4 + $0x1d0] sm:$0xff] %v818
  %834 = vst [vmem:[#allocation4 + $0x1d8] sm:$0xff] %v819
  %835 = vst [vmem:[#allocation4 + $0x1e0] sm:$0xff] %v820
  %836 = vst [vmem:[#allocation4 + $0x1e8] sm:$0xff] %v821
  %837 = vst [vmem:[#allocation4 + $0x1f0] sm:$0xff] %v822
  %838 = vst.msk [vmem:[#allocation4 + $0x1f8] sm:$0xff] %vm452, %v815
  %v839 = vld [vmem:[#allocation2] sm:$0xff]
  %v840 = vld [vmem:[#allocation2 + $0x8] sm:$0xff]
  %v841 = vld [vmem:[#allocation2 + $0x10] sm:$0xff]
  %v842 = vld [vmem:[#allocation2 + $0x18] sm:$0xff]
  %v843 = vld [vmem:[#allocation2 + $0x20] sm:$0xff]
  %v844 = vld [vmem:[#allocation2 + $0x28] sm:$0xff]
  %v845 = vld [vmem:[#allocation2 + $0x30] sm:$0xff]
  %v846 = vld [vmem:[#allocation2 + $0x38] sm:$0xff]
  %855 = vrot.lane.b32.xlu0 %v839, 44
  %v856 = vpop.permute.xlu0 %855
  %857 = vrot.lane.b32.xlu0 %v840, 44
  %v858 = vpop.permute.xlu0 %857
  %859 = vrot.lane.b32.xlu0 %v841, 44
  %v860 = vpop.permute.xlu0 %859
  %861 = vrot.lane.b32.xlu0 %v842, 44
  %v862 = vpop.permute.xlu0 %861
  %863 = vrot.lane.b32.xlu0 %v843, 44
  %v864 = vpop.permute.xlu0 %863
  %865 = vrot.lane.b32.xlu0 %v844, 44
  %v866 = vpop.permute.xlu0 %865
  %867 = vrot.lane.b32.xlu0 %v845, 44
  %v868 = vpop.permute.xlu0 %867
  %869 = vrot.lane.b32.xlu0 %v846, 44
  %v870 = vpop.permute.xlu0 %869
  %v871 = vsel %vm136, %v856, %v858
  %v872 = vsel %vm136, %v858, %v860
  %v873 = vsel %vm136, %v860, %v862
  %v874 = vsel %vm136, %v862, %v864
  %v875 = vsel %vm136, %v864, %v866
  %v876 = vsel %vm136, %v866, %v868
  %v877 = vsel %vm136, %v868, %v870
  %886 = vst [vmem:[#allocation4 + $0x200] sm:$0xff] %v871
  %887 = vst [vmem:[#allocation4 + $0x208] sm:$0xff] %v872
  %888 = vst [vmem:[#allocation4 + $0x210] sm:$0xff] %v873
  %889 = vst [vmem:[#allocation4 + $0x218] sm:$0xff] %v874
  %890 = vst [vmem:[#allocation4 + $0x220] sm:$0xff] %v875
  %891 = vst [vmem:[#allocation4 + $0x228] sm:$0xff] %v876
  %892 = vst [vmem:[#allocation4 + $0x230] sm:$0xff] %v877
  %893 = vst.msk [vmem:[#allocation4 + $0x238] sm:$0xff] %vm452, %v870
  %v894 = vld [vmem:[#allocation4] sm:$0xff]
  %v895 = vld [vmem:[#allocation4 + $0x8] sm:$0xff]
  %v896 = vld [vmem:[#allocation4 + $0x10] sm:$0xff]
  %v897 = vld [vmem:[#allocation4 + $0x18] sm:$0xff]
  %v898 = vld [vmem:[#allocation4 + $0x20] sm:$0xff]
  %v899 = vld [vmem:[#allocation4 + $0x28] sm:$0xff]
  %v900 = vld [vmem:[#allocation4 + $0x30] sm:$0xff]
  %v901 = vld [vmem:[#allocation4 + $0x38] sm:$0xff]
  %v902 = vld [vmem:[#allocation4 + $0x40] sm:$0xff]
  %v903 = vld [vmem:[#allocation4 + $0x48] sm:$0xff]
  %v904 = vld [vmem:[#allocation4 + $0x50] sm:$0xff]
  %v905 = vld [vmem:[#allocation4 + $0x58] sm:$0xff]
  %v906 = vld [vmem:[#allocation4 + $0x60] sm:$0xff]
  %v907 = vld [vmem:[#allocation4 + $0x68] sm:$0xff]
  %v908 = vld [vmem:[#allocation4 + $0x70] sm:$0xff]
  %v909 = vld [vmem:[#allocation4 + $0x78] sm:$0xff]
  %v910 = vld [vmem:[#allocation4 + $0x80] sm:$0xff]
  %v911 = vld [vmem:[#allocation4 + $0x88] sm:$0xff]
  %v912 = vld [vmem:[#allocation4 + $0x90] sm:$0xff]
  %v913 = vld [vmem:[#allocation4 + $0x98] sm:$0xff]
  %v914 = vld [vmem:[#allocation4 + $0xa0] sm:$0xff]
  %v915 = vld [vmem:[#allocation4 + $0xa8] sm:$0xff]
  %v916 = vld [vmem:[#allocation4 + $0xb0] sm:$0xff]
  %v917 = vld [vmem:[#allocation4 + $0xb8] sm:$0xff]
  %v918 = vld [vmem:[#allocation4 + $0xc0] sm:$0xff]
  %v919 = vld [vmem:[#allocation4 + $0xc8] sm:$0xff]
  %v920 = vld [vmem:[#allocation4 + $0xd0] sm:$0xff]
  %v921 = vld [vmem:[#allocation4 + $0xd8] sm:$0xff]
  %v922 = vld [vmem:[#allocation4 + $0xe0] sm:$0xff]
  %v923 = vld [vmem:[#allocation4 + $0xe8] sm:$0xff]
  %v924 = vld [vmem:[#allocation4 + $0xf0] sm:$0xff]
  %v925 = vld [vmem:[#allocation4 + $0xf8] sm:$0xff]
  %v926 = vld [vmem:[#allocation4 + $0x100] sm:$0xff]
  %v927 = vld [vmem:[#allocation4 + $0x108] sm:$0xff]
  %v928 = vld [vmem:[#allocation4 + $0x110] sm:$0xff]
  %v929 = vld [vmem:[#allocation4 + $0x118] sm:$0xff]
  %v930 = vld [vmem:[#allocation4 + $0x120] sm:$0xff]
  %v931 = vld [vmem:[#allocation4 + $0x128] sm:$0xff]
  %v932 = vld [vmem:[#allocation4 + $0x130] sm:$0xff]
  %v933 = vld [vmem:[#allocation4 + $0x138] sm:$0xff]
  %v934 = vld [vmem:[#allocation4 + $0x140] sm:$0xff]
  %v935 = vld [vmem:[#allocation4 + $0x148] sm:$0xff]
  %v936 = vld [vmem:[#allocation4 + $0x150] sm:$0xff]
  %v937 = vld [vmem:[#allocation4 + $0x158] sm:$0xff]
  %v938 = vld [vmem:[#allocation4 + $0x160] sm:$0xff]
  %v939 = vld [vmem:[#allocation4 + $0x168] sm:$0xff]
  %v940 = vld [vmem:[#allocation4 + $0x170] sm:$0xff]
  %v941 = vld [vmem:[#allocation4 + $0x178] sm:$0xff]
  %v942 = vld [vmem:[#allocation4 + $0x180] sm:$0xff]
  %v943 = vld [vmem:[#allocation4 + $0x188] sm:$0xff]
  %v944 = vld [vmem:[#allocation4 + $0x190] sm:$0xff]
  %v945 = vld [vmem:[#allocation4 + $0x198] sm:$0xff]
  %v946 = vld [vmem:[#allocation4 + $0x1a0] sm:$0xff]
  %v947 = vld [vmem:[#allocation4 + $0x1a8] sm:$0xff]
  %v948 = vld [vmem:[#allocation4 + $0x1b0] sm:$0xff]
  %v949 = vld [vmem:[#allocation4 + $0x1b8] sm:$0xff]
  %v950 = vld [vmem:[#allocation4 + $0x1c0] sm:$0xff]
  %v951 = vld [vmem:[#allocation4 + $0x1c8] sm:$0xff]
  %v952 = vld [vmem:[#allocation4 + $0x1d0] sm:$0xff]
  %v953 = vld [vmem:[#allocation4 + $0x1d8] sm:$0xff]
  %v954 = vld [vmem:[#allocation4 + $0x1e0] sm:$0xff]
  %v955 = vld [vmem:[#allocation4 + $0x1e8] sm:$0xff]
  %v956 = vld [vmem:[#allocation4 + $0x1f0] sm:$0xff]
  %v957 = vld [vmem:[#allocation4 + $0x1f8] sm:$0xff]
  %v958 = vld [vmem:[#allocation4 + $0x200] sm:$0xff]
  %v959 = vld [vmem:[#allocation4 + $0x208] sm:$0xff]
  %v960 = vld [vmem:[#allocation4 + $0x210] sm:$0xff]
  %v961 = vld [vmem:[#allocation4 + $0x218] sm:$0xff]
  %v962 = vld [vmem:[#allocation4 + $0x220] sm:$0xff]
  %v963 = vld [vmem:[#allocation4 + $0x228] sm:$0xff]
  %v964 = vld [vmem:[#allocation4 + $0x230] sm:$0xff]
  %v965 = vld [vmem:[#allocation4 + $0x238] sm:$0xff]
  %v966 = vld [vmem:[%s4] sm:$0xff]
  %v967 = vld [vmem:[%s5] sm:$0xff]
  %969 = vset.pattern.permute.xlu0 0
  %970 = vperm.xlu0 %969, %v967
  %v971 = vpop.permute.xlu0 %970
  %vm973 = vcmask 588800
  %v975 = vsel %vm973, %v966, 0
  %977 = vmatpush.msra.mxu0 0.0
  %978 = vmatpush.msra.mxu0 0.0
  %979 = vmatpush.msra.mxu0 0.0
  %980 = vmatpush.msra.mxu0 0.0
  %981 = vmatpush.msra.mxu0 0.0
  %982 = vmatpush.msra.mxu0 0.0
  %983 = vmatpush.msra.mxu0 0.0
  %984 = vmatpush.msra.mxu0 %v958
  %985 = vmatpush.msra.mxu0 %v950
  %986 = vmatpush.msra.mxu0 %v942
  %987 = vmatpush.msra.mxu0 %v934
  %988 = vmatpush.msra.mxu0 %v926
  %989 = vmatpush.msra.mxu0 %v918
  %990 = vmatpush.msra.mxu0 %v910
  %991 = vmatpush.msra.mxu0 %v902
  %992 = vmatpush.msra.mxu0 %v894
  %993 = vmatmul.f32.gmra.mxu0 %v975
  %v994 = vpop.f32.mrf.mxu0
  %v995 = vadd.f32 %v971, %v994
  %996 = vdwg.mxu0
  %997 = vmatpush.msra.mxu0 0.0
  %998 = vmatpush.msra.mxu0 0.0
  %999 = vmatpush.msra.mxu0 0.0
  %1000 = vmatpush.msra.mxu0 0.0
  %1001 = vmatpush.msra.mxu0 0.0
  %1002 = vmatpush.msra.mxu0 0.0
  %1003 = vmatpush.msra.mxu0 0.0
  %1004 = vmatpush.msra.mxu0 %v959
  %1005 = vmatpush.msra.mxu0 %v951
  %1006 = vmatpush.msra.mxu0 %v943
  %1007 = vmatpush.msra.mxu0 %v935
  %1008 = vmatpush.msra.mxu0 %v927
  %1009 = vmatpush.msra.mxu0 %v919
  %1010 = vmatpush.msra.mxu0 %v911
  %1011 = vmatpush.msra.mxu0 %v903
  %1012 = vmatpush.msra.mxu0 %v895
  %1013 = vmatmul.f32.gmra.mxu0 %v975
  %v1014 = vpop.f32.mrf.mxu0
  %v1015 = vadd.f32 %v971, %v1014
  %1016 = vdwg.mxu0
  %1017 = vmatpush.msra.mxu0 0.0
  %1018 = vmatpush.msra.mxu0 0.0
  %1019 = vmatpush.msra.mxu0 0.0
  %1020 = vmatpush.msra.mxu0 0.0
  %1021 = vmatpush.msra.mxu0 0.0
  %1022 = vmatpush.msra.mxu0 0.0
  %1023 = vmatpush.msra.mxu0 0.0
  %1024 = vmatpush.msra.mxu0 %v960
  %1025 = vmatpush.msra.mxu0 %v952
  %1026 = vmatpush.msra.mxu0 %v944
  %1027 = vmatpush.msra.mxu0 %v936
  %1028 = vmatpush.msra.mxu0 %v928
  %1029 = vmatpush.msra.mxu0 %v920
  %1030 = vmatpush.msra.mxu0 %v912
  %1031 = vmatpush.msra.mxu0 %v904
  %1032 = vmatpush.msra.mxu0 %v896
  %1033 = vmatmul.f32.gmra.mxu0 %v975
  %v1034 = vpop.f32.mrf.mxu0
  %v1035 = vadd.f32 %v971, %v1034
  %1036 = vdwg.mxu0
  %1037 = vmatpush.msra.mxu0 0.0
  %1038 = vmatpush.msra.mxu0 0.0
  %1039 = vmatpush.msra.mxu0 0.0
  %1040 = vmatpush.msra.mxu0 0.0
  %1041 = vmatpush.msra.mxu0 0.0
  %1042 = vmatpush.msra.mxu0 0.0
  %1043 = vmatpush.msra.mxu0 0.0
  %1044 = vmatpush.msra.mxu0 %v961
  %1045 = vmatpush.msra.mxu0 %v953
  %1046 = vmatpush.msra.mxu0 %v945
  %1047 = vmatpush.msra.mxu0 %v937
  %1048 = vmatpush.msra.mxu0 %v929
  %1049 = vmatpush.msra.mxu0 %v921
  %1050 = vmatpush.msra.mxu0 %v913
  %1051 = vmatpush.msra.mxu0 %v905
  %1052 = vmatpush.msra.mxu0 %v897
  %1053 = vmatmul.f32.gmra.mxu0 %v975
  %v1054 = vpop.f32.mrf.mxu0
  %v1055 = vadd.f32 %v971, %v1054
  %1056 = vdwg.mxu0
  %1057 = vmatpush.msra.mxu0 0.0
  %1058 = vmatpush.msra.mxu0 0.0
  %1059 = vmatpush.msra.mxu0 0.0
  %1060 = vmatpush.msra.mxu0 0.0
  %1061 = vmatpush.msra.mxu0 0.0
  %1062 = vmatpush.msra.mxu0 0.0
  %1063 = vmatpush.msra.mxu0 0.0
  %1064 = vmatpush.msra.mxu0 %v962
  %1065 = vmatpush.msra.mxu0 %v954
  %1066 = vmatpush.msra.mxu0 %v946
  %1067 = vmatpush.msra.mxu0 %v938
  %1068 = vmatpush.msra.mxu0 %v930
  %1069 = vmatpush.msra.mxu0 %v922
  %1070 = vmatpush.msra.mxu0 %v914
  %1071 = vmatpush.msra.mxu0 %v906
  %1072 = vmatpush.msra.mxu0 %v898
  %1073 = vmatmul.f32.gmra.mxu0 %v975
  %v1074 = vpop.f32.mrf.mxu0
  %v1075 = vadd.f32 %v971, %v1074
  %1076 = vdwg.mxu0
  %1077 = vmatpush.msra.mxu0 0.0
  %1078 = vmatpush.msra.mxu0 0.0
  %1079 = vmatpush.msra.mxu0 0.0
  %1080 = vmatpush.msra.mxu0 0.0
  %1081 = vmatpush.msra.mxu0 0.0
  %1082 = vmatpush.msra.mxu0 0.0
  %1083 = vmatpush.msra.mxu0 0.0
  %1084 = vmatpush.msra.mxu0 %v963
  %1085 = vmatpush.msra.mxu0 %v955
  %1086 = vmatpush.msra.mxu0 %v947
  %1087 = vmatpush.msra.mxu0 %v939
  %1088 = vmatpush.msra.mxu0 %v931
  %1089 = vmatpush.msra.mxu0 %v923
  %1090 = vmatpush.msra.mxu0 %v915
  %1091 = vmatpush.msra.mxu0 %v907
  %1092 = vmatpush.msra.mxu0 %v899
  %1093 = vmatmul.f32.gmra.mxu0 %v975
  %v1094 = vpop.f32.mrf.mxu0
  %v1095 = vadd.f32 %v971, %v1094
  %1096 = vdwg.mxu0
  %1097 = vmatpush.msra.mxu0 0.0
  %1098 = vmatpush.msra.mxu0 0.0
  %1099 = vmatpush.msra.mxu0 0.0
  %1100 = vmatpush.msra.mxu0 0.0
  %1101 = vmatpush.msra.mxu0 0.0
  %1102 = vmatpush.msra.mxu0 0.0
  %1103 = vmatpush.msra.mxu0 0.0
  %1104 = vmatpush.msra.mxu0 %v964
  %1105 = vmatpush.msra.mxu0 %v956
  %1106 = vmatpush.msra.mxu0 %v948
  %1107 = vmatpush.msra.mxu0 %v940
  %1108 = vmatpush.msra.mxu0 %v932
  %1109 = vmatpush.msra.mxu0 %v924
  %1110 = vmatpush.msra.mxu0 %v916
  %1111 = vmatpush.msra.mxu0 %v908
  %1112 = vmatpush.msra.mxu0 %v900
  %1113 = vmatmul.f32.gmra.mxu0 %v975
  %v1114 = vpop.f32.mrf.mxu0
  %v1115 = vadd.f32 %v971, %v1114
  %1116 = vdwg.mxu0
  %1117 = vmatpush.msra.mxu0 0.0
  %1118 = vmatpush.msra.mxu0 0.0
  %1119 = vmatpush.msra.mxu0 0.0
  %1120 = vmatpush.msra.mxu0 0.0
  %1121 = vmatpush.msra.mxu0 0.0
  %1122 = vmatpush.msra.mxu0 0.0
  %1123 = vmatpush.msra.mxu0 0.0
  %1124 = vmatpush.msra.mxu0 %v965
  %1125 = vmatpush.msra.mxu0 %v957
  %1126 = vmatpush.msra.mxu0 %v949
  %1127 = vmatpush.msra.mxu0 %v941
  %1128 = vmatpush.msra.mxu0 %v933
  %1129 = vmatpush.msra.mxu0 %v925
  %1130 = vmatpush.msra.mxu0 %v917
  %1131 = vmatpush.msra.mxu0 %v909
  %1132 = vmatpush.msra.mxu0 %v901
  %1133 = vmatmul.f32.gmra.mxu0 %v975
  %v1134 = vpop.f32.mrf.mxu0
  %v1135 = vadd.f32 %v971, %v1134
  %1136 = vdwg.mxu0
  %v1137 = vmax.f32 %v995, 0.0
  %v1138 = vmax.f32 %v1015, 0.0
  %v1139 = vmax.f32 %v1035, 0.0
  %v1140 = vmax.f32 %v1055, 0.0
  %v1141 = vmax.f32 %v1075, 0.0
  %v1142 = vmax.f32 %v1095, 0.0
  %v1143 = vmax.f32 %v1115, 0.0
  %v1144 = vmax.f32 %v1135, 0.0
  %v1145 = vsel %vm371, %v1137, 0.0
  %v1146 = vsel %vm372, %v1138, 0.0
  %v1147 = vsel %vm373, %v1139, 0.0
  %v1148 = vsel %vm374, %v1140, 0.0
  %v1149 = vsel %vm375, %v1141, 0.0
  %v1150 = vsel %vm376, %v1142, 0.0
  %v1151 = vsel %vm377, %v1143, 0.0
  %v1152 = vsel %vm378, %v1144, 0.0
  %1161 = vrot.lane.b32.xlu0 %v1145, 42
  %v1162 = vpop.permute.xlu0 %1161
  %1163 = vrot.lane.b32.xlu0 %v1146, 42
  %v1164 = vpop.permute.xlu0 %1163
  %1165 = vrot.lane.b32.xlu0 %v1147, 42
  %v1166 = vpop.permute.xlu0 %1165
  %1167 = vrot.lane.b32.xlu0 %v1148, 42
  %v1168 = vpop.permute.xlu0 %1167
  %1169 = vrot.lane.b32.xlu0 %v1149, 42
  %v1170 = vpop.permute.xlu0 %1169
  %1171 = vrot.lane.b32.xlu0 %v1150, 42
  %v1172 = vpop.permute.xlu0 %1171
  %1173 = vrot.lane.b32.xlu0 %v1151, 42
  %v1174 = vpop.permute.xlu0 %1173
  %1175 = vrot.lane.b32.xlu0 %v1152, 42
  %v1176 = vpop.permute.xlu0 %1175
  %v1177 = vsel %vm411, %v1162, %v1164
  %v1178 = vsel %vm411, %v1164, %v1166
  %v1179 = vsel %vm411, %v1166, %v1168
  %v1180 = vsel %vm411, %v1168, %v1170
  %v1181 = vsel %vm411, %v1170, %v1172
  %v1182 = vsel %vm411, %v1172, %v1174
  %v1183 = vsel %vm411, %v1174, %v1176
  %1192 = vst.msk [vmem:[#allocation3] sm:$0xff] %vm427, %v1162
  %1193 = vst [vmem:[#allocation3 + $0x8] sm:$0xff] %v1177
  %1194 = vst [vmem:[#allocation3 + $0x10] sm:$0xff] %v1178
  %1195 = vst [vmem:[#allocation3 + $0x18] sm:$0xff] %v1179
  %1196 = vst [vmem:[#allocation3 + $0x20] sm:$0xff] %v1180
  %1197 = vst [vmem:[#allocation3 + $0x28] sm:$0xff] %v1181
  %1198 = vst [vmem:[#allocation3 + $0x30] sm:$0xff] %v1182
  %1199 = vst.msk [vmem:[#allocation3 + $0x38] sm:$0xff] %vm435, %v1183
  %v1200 = vld [vmem:[#allocation3] sm:$0xff]
  %v1201 = vld [vmem:[#allocation3 + $0x8] sm:$0xff]
  %v1202 = vld [vmem:[#allocation3 + $0x10] sm:$0xff]
  %v1203 = vld [vmem:[#allocation3 + $0x18] sm:$0xff]
  %v1204 = vld [vmem:[#allocation3 + $0x20] sm:$0xff]
  %v1205 = vld [vmem:[#allocation3 + $0x28] sm:$0xff]
  %v1206 = vld [vmem:[#allocation3 + $0x30] sm:$0xff]
  %v1207 = vld [vmem:[#allocation3 + $0x38] sm:$0xff]
  %1208 = vst [vmem:[#allocation4] sm:$0xff] %v1200
  %1209 = vst [vmem:[#allocation4 + $0x8] sm:$0xff] %v1201
  %1210 = vst [vmem:[#allocation4 + $0x10] sm:$0xff] %v1202
  %1211 = vst [vmem:[#allocation4 + $0x18] sm:$0xff] %v1203
  %1212 = vst [vmem:[#allocation4 + $0x20] sm:$0xff] %v1204
  %1213 = vst [vmem:[#allocation4 + $0x28] sm:$0xff] %v1205
  %1214 = vst [vmem:[#allocation4 + $0x30] sm:$0xff] %v1206
  %1215 = vst.msk [vmem:[#allocation4 + $0x38] sm:$0xff] %vm452, %v1207
  %v1216 = vld [vmem:[#allocation3] sm:$0xff]
  %v1217 = vld [vmem:[#allocation3 + $0x8] sm:$0xff]
  %v1218 = vld [vmem:[#allocation3 + $0x10] sm:$0xff]
  %v1219 = vld [vmem:[#allocation3 + $0x18] sm:$0xff]
  %v1220 = vld [vmem:[#allocation3 + $0x20] sm:$0xff]
  %v1221 = vld [vmem:[#allocation3 + $0x28] sm:$0xff]
  %v1222 = vld [vmem:[#allocation3 + $0x30] sm:$0xff]
  %v1223 = vld [vmem:[#allocation3 + $0x38] sm:$0xff]
  %1232 = vrot.lane.b32.xlu0 %v1216, 126
  %v1233 = vpop.permute.xlu0 %1232
  %1234 = vrot.lane.b32.xlu0 %v1217, 126
  %v1235 = vpop.permute.xlu0 %1234
  %1236 = vrot.lane.b32.xlu0 %v1218, 126
  %v1237 = vpop.permute.xlu0 %1236
  %1238 = vrot.lane.b32.xlu0 %v1219, 126
  %v1239 = vpop.permute.xlu0 %1238
  %1240 = vrot.lane.b32.xlu0 %v1220, 126
  %v1241 = vpop.permute.xlu0 %1240
  %1242 = vrot.lane.b32.xlu0 %v1221, 126
  %v1243 = vpop.permute.xlu0 %1242
  %1244 = vrot.lane.b32.xlu0 %v1222, 126
  %v1245 = vpop.permute.xlu0 %1244
  %1246 = vrot.lane.b32.xlu0 %v1223, 126
  %v1247 = vpop.permute.xlu0 %1246
  %v1248 = vsel %vm59, %v1233, %v1235
  %v1249 = vsel %vm59, %v1235, %v1237
  %v1250 = vsel %vm59, %v1237, %v1239
  %v1251 = vsel %vm59, %v1239, %v1241
  %v1252 = vsel %vm59, %v1241, %v1243
  %v1253 = vsel %vm59, %v1243, %v1245
  %v1254 = vsel %vm59, %v1245, %v1247
  %1263 = vst [vmem:[#allocation4 + $0x40] sm:$0xff] %v1248
  %1264 = vst [vmem:[#allocation4 + $0x48] sm:$0xff] %v1249
  %1265 = vst [vmem:[#allocation4 + $0x50] sm:$0xff] %v1250
  %1266 = vst [vmem:[#allocation4 + $0x58] sm:$0xff] %v1251
  %1267 = vst [vmem:[#allocation4 + $0x60] sm:$0xff] %v1252
  %1268 = vst [vmem:[#allocation4 + $0x68] sm:$0xff] %v1253
  %1269 = vst [vmem:[#allocation4 + $0x70] sm:$0xff] %v1254
  %1270 = vst.msk [vmem:[#allocation4 + $0x78] sm:$0xff] %vm452, %v1247
  %v1271 = vld [vmem:[#allocation3] sm:$0xff]
  %v1272 = vld [vmem:[#allocation3 + $0x8] sm:$0xff]
  %v1273 = vld [vmem:[#allocation3 + $0x10] sm:$0xff]
  %v1274 = vld [vmem:[#allocation3 + $0x18] sm:$0xff]
  %v1275 = vld [vmem:[#allocation3 + $0x20] sm:$0xff]
  %v1276 = vld [vmem:[#allocation3 + $0x28] sm:$0xff]
  %v1277 = vld [vmem:[#allocation3 + $0x30] sm:$0xff]
  %v1278 = vld [vmem:[#allocation3 + $0x38] sm:$0xff]
  %1287 = vrot.lane.b32.xlu0 %v1271, 124
  %v1288 = vpop.permute.xlu0 %1287
  %1289 = vrot.lane.b32.xlu0 %v1272, 124
  %v1290 = vpop.permute.xlu0 %1289
  %1291 = vrot.lane.b32.xlu0 %v1273, 124
  %v1292 = vpop.permute.xlu0 %1291
  %1293 = vrot.lane.b32.xlu0 %v1274, 124
  %v1294 = vpop.permute.xlu0 %1293
  %1295 = vrot.lane.b32.xlu0 %v1275, 124
  %v1296 = vpop.permute.xlu0 %1295
  %1297 = vrot.lane.b32.xlu0 %v1276, 124
  %v1298 = vpop.permute.xlu0 %1297
  %1299 = vrot.lane.b32.xlu0 %v1277, 124
  %v1300 = vpop.permute.xlu0 %1299
  %1301 = vrot.lane.b32.xlu0 %v1278, 124
  %v1302 = vpop.permute.xlu0 %1301
  %v1303 = vsel %vm70, %v1288, %v1290
  %v1304 = vsel %vm70, %v1290, %v1292
  %v1305 = vsel %vm70, %v1292, %v1294
  %v1306 = vsel %vm70, %v1294, %v1296
  %v1307 = vsel %vm70, %v1296, %v1298
  %v1308 = vsel %vm70, %v1298, %v1300
  %v1309 = vsel %vm70, %v1300, %v1302
  %1318 = vst [vmem:[#allocation4 + $0x80] sm:$0xff] %v1303
  %1319 = vst [vmem:[#allocation4 + $0x88] sm:$0xff] %v1304
  %1320 = vst [vmem:[#allocation4 + $0x90] sm:$0xff] %v1305
  %1321 = vst [vmem:[#allocation4 + $0x98] sm:$0xff] %v1306
  %1322 = vst [vmem:[#allocation4 + $0xa0] sm:$0xff] %v1307
  %1323 = vst [vmem:[#allocation4 + $0xa8] sm:$0xff] %v1308
  %1324 = vst [vmem:[#allocation4 + $0xb0] sm:$0xff] %v1309
  %1325 = vst.msk [vmem:[#allocation4 + $0xb8] sm:$0xff] %vm452, %v1302
  %v1326 = vld [vmem:[#allocation3] sm:$0xff]
  %v1327 = vld [vmem:[#allocation3 + $0x8] sm:$0xff]
  %v1328 = vld [vmem:[#allocation3 + $0x10] sm:$0xff]
  %v1329 = vld [vmem:[#allocation3 + $0x18] sm:$0xff]
  %v1330 = vld [vmem:[#allocation3 + $0x20] sm:$0xff]
  %v1331 = vld [vmem:[#allocation3 + $0x28] sm:$0xff]
  %v1332 = vld [vmem:[#allocation3 + $0x30] sm:$0xff]
  %v1333 = vld [vmem:[#allocation3 + $0x38] sm:$0xff]
  %1342 = vrot.lane.b32.xlu0 %v1326, 88
  %v1343 = vpop.permute.xlu0 %1342
  %1344 = vrot.lane.b32.xlu0 %v1327, 88
  %v1345 = vpop.permute.xlu0 %1344
  %1346 = vrot.lane.b32.xlu0 %v1328, 88
  %v1347 = vpop.permute.xlu0 %1346
  %1348 = vrot.lane.b32.xlu0 %v1329, 88
  %v1349 = vpop.permute.xlu0 %1348
  %1350 = vrot.lane.b32.xlu0 %v1330, 88
  %v1351 = vpop.permute.xlu0 %1350
  %1352 = vrot.lane.b32.xlu0 %v1331, 88
  %v1353 = vpop.permute.xlu0 %1352
  %1354 = vrot.lane.b32.xlu0 %v1332, 88
  %v1355 = vpop.permute.xlu0 %1354
  %1356 = vrot.lane.b32.xlu0 %v1333, 88
  %v1357 = vpop.permute.xlu0 %1356
  %v1358 = vsel %vm81, %v1343, %v1345
  %v1359 = vsel %vm81, %v1345, %v1347
  %v1360 = vsel %vm81, %v1347, %v1349
  %v1361 = vsel %vm81, %v1349, %v1351
  %v1362 = vsel %vm81, %v1351, %v1353
  %v1363 = vsel %vm81, %v1353, %v1355
  %v1364 = vsel %vm81, %v1355, %v1357
  %1373 = vst [vmem:[#allocation4 + $0xc0] sm:$0xff] %v1358
  %1374 = vst [vmem:[#allocation4 + $0xc8] sm:$0xff] %v1359
  %1375 = vst [vmem:[#allocation4 + $0xd0] sm:$0xff] %v1360
  %1376 = vst [vmem:[#allocation4 + $0xd8] sm:$0xff] %v1361
  %1377 = vst [vmem:[#allocation4 + $0xe0] sm:$0xff] %v1362
  %1378 = vst [vmem:[#allocation4 + $0xe8] sm:$0xff] %v1363
  %1379 = vst [vmem:[#allocation4 + $0xf0] sm:$0xff] %v1364
  %1380 = vst.msk [vmem:[#allocation4 + $0xf8] sm:$0xff] %vm452, %v1357
  %v1381 = vld [vmem:[#allocation3] sm:$0xff]
  %v1382 = vld [vmem:[#allocation3 + $0x8] sm:$0xff]
  %v1383 = vld [vmem:[#allocation3 + $0x10] sm:$0xff]
  %v1384 = vld [vmem:[#allocation3 + $0x18] sm:$0xff]
  %v1385 = vld [vmem:[#allocation3 + $0x20] sm:$0xff]
  %v1386 = vld [vmem:[#allocation3 + $0x28] sm:$0xff]
  %v1387 = vld [vmem:[#allocation3 + $0x30] sm:$0xff]
  %v1388 = vld [vmem:[#allocation3 + $0x38] sm:$0xff]
  %1397 = vrot.lane.b32.xlu0 %v1381, 86
  %v1398 = vpop.permute.xlu0 %1397
  %1399 = vrot.lane.b32.xlu0 %v1382, 86
  %v1400 = vpop.permute.xlu0 %1399
  %1401 = vrot.lane.b32.xlu0 %v1383, 86
  %v1402 = vpop.permute.xlu0 %1401
  %1403 = vrot.lane.b32.xlu0 %v1384, 86
  %v1404 = vpop.permute.xlu0 %1403
  %1405 = vrot.lane.b32.xlu0 %v1385, 86
  %v1406 = vpop.permute.xlu0 %1405
  %1407 = vrot.lane.b32.xlu0 %v1386, 86
  %v1408 = vpop.permute.xlu0 %1407
  %1409 = vrot.lane.b32.xlu0 %v1387, 86
  %v1410 = vpop.permute.xlu0 %1409
  %1411 = vrot.lane.b32.xlu0 %v1388, 86
  %v1412 = vpop.permute.xlu0 %1411
  %v1413 = vsel %vm92, %v1398, %v1400
  %v1414 = vsel %vm92, %v1400, %v1402
  %v1415 = vsel %vm92, %v1402, %v1404
  %v1416 = vsel %vm92, %v1404, %v1406
  %v1417 = vsel %vm92, %v1406, %v1408
  %v1418 = vsel %vm92, %v1408, %v1410
  %v1419 = vsel %vm92, %v1410, %v1412
  %1428 = vst [vmem:[#allocation4 + $0x100] sm:$0xff] %v1413
  %1429 = vst [vmem:[#allocation4 + $0x108] sm:$0xff] %v1414
  %1430 = vst [vmem:[#allocation4 + $0x110] sm:$0xff] %v1415
  %1431 = vst [vmem:[#allocation4 + $0x118] sm:$0xff] %v1416
  %1432 = vst [vmem:[#allocation4 + $0x120] sm:$0xff] %v1417
  %1433 = vst [vmem:[#allocation4 + $0x128] sm:$0xff] %v1418
  %1434 = vst [vmem:[#allocation4 + $0x130] sm:$0xff] %v1419
  %1435 = vst.msk [vmem:[#allocation4 + $0x138] sm:$0xff] %vm452, %v1412
  %v1436 = vld [vmem:[#allocation3] sm:$0xff]
  %v1437 = vld [vmem:[#allocation3 + $0x8] sm:$0xff]
  %v1438 = vld [vmem:[#allocation3 + $0x10] sm:$0xff]
  %v1439 = vld [vmem:[#allocation3 + $0x18] sm:$0xff]
  %v1440 = vld [vmem:[#allocation3 + $0x20] sm:$0xff]
  %v1441 = vld [vmem:[#allocation3 + $0x28] sm:$0xff]
  %v1442 = vld [vmem:[#allocation3 + $0x30] sm:$0xff]
  %v1443 = vld [vmem:[#allocation3 + $0x38] sm:$0xff]
  %1452 = vrot.lane.b32.xlu0 %v1436, 84
  %v1453 = vpop.permute.xlu0 %1452
  %1454 = vrot.lane.b32.xlu0 %v1437, 84
  %v1455 = vpop.permute.xlu0 %1454
  %1456 = vrot.lane.b32.xlu0 %v1438, 84
  %v1457 = vpop.permute.xlu0 %1456
  %1458 = vrot.lane.b32.xlu0 %v1439, 84
  %v1459 = vpop.permute.xlu0 %1458
  %1460 = vrot.lane.b32.xlu0 %v1440, 84
  %v1461 = vpop.permute.xlu0 %1460
  %1462 = vrot.lane.b32.xlu0 %v1441, 84
  %v1463 = vpop.permute.xlu0 %1462
  %1464 = vrot.lane.b32.xlu0 %v1442, 84
  %v1465 = vpop.permute.xlu0 %1464
  %1466 = vrot.lane.b32.xlu0 %v1443, 84
  %v1467 = vpop.permute.xlu0 %1466
  %v1468 = vsel %vm103, %v1453, %v1455
  %v1469 = vsel %vm103, %v1455, %v1457
  %v1470 = vsel %vm103, %v1457, %v1459
  %v1471 = vsel %vm103, %v1459, %v1461
  %v1472 = vsel %vm103, %v1461, %v1463
  %v1473 = vsel %vm103, %v1463, %v1465
  %v1474 = vsel %vm103, %v1465, %v1467
  %1483 = vst [vmem:[#allocation4 + $0x140] sm:$0xff] %v1468
  %1484 = vst [vmem:[#allocation4 + $0x148] sm:$0xff] %v1469
  %1485 = vst [vmem:[#allocation4 + $0x150] sm:$0xff] %v1470
  %1486 = vst [vmem:[#allocation4 + $0x158] sm:$0xff] %v1471
  %1487 = vst [vmem:[#allocation4 + $0x160] sm:$0xff] %v1472
  %1488 = vst [vmem:[#allocation4 + $0x168] sm:$0xff] %v1473
  %1489 = vst [vmem:[#allocation4 + $0x170] sm:$0xff] %v1474
  %1490 = vst.msk [vmem:[#allocation4 + $0x178] sm:$0xff] %vm452, %v1467
  %v1491 = vld [vmem:[#allocation3] sm:$0xff]
  %v1492 = vld [vmem:[#allocation3 + $0x8] sm:$0xff]
  %v1493 = vld [vmem:[#allocation3 + $0x10] sm:$0xff]
  %v1494 = vld [vmem:[#allocation3 + $0x18] sm:$0xff]
  %v1495 = vld [vmem:[#allocation3 + $0x20] sm:$0xff]
  %v1496 = vld [vmem:[#allocation3 + $0x28] sm:$0xff]
  %v1497 = vld [vmem:[#allocation3 + $0x30] sm:$0xff]
  %v1498 = vld [vmem:[#allocation3 + $0x38] sm:$0xff]
  %1507 = vrot.lane.b32.xlu0 %v1491, 48
  %v1508 = vpop.permute.xlu0 %1507
  %1509 = vrot.lane.b32.xlu0 %v1492, 48
  %v1510 = vpop.permute.xlu0 %1509
  %1511 = vrot.lane.b32.xlu0 %v1493, 48
  %v1512 = vpop.permute.xlu0 %1511
  %1513 = vrot.lane.b32.xlu0 %v1494, 48
  %v1514 = vpop.permute.xlu0 %1513
  %1515 = vrot.lane.b32.xlu0 %v1495, 48
  %v1516 = vpop.permute.xlu0 %1515
  %1517 = vrot.lane.b32.xlu0 %v1496, 48
  %v1518 = vpop.permute.xlu0 %1517
  %1519 = vrot.lane.b32.xlu0 %v1497, 48
  %v1520 = vpop.permute.xlu0 %1519
  %1521 = vrot.lane.b32.xlu0 %v1498, 48
  %v1522 = vpop.permute.xlu0 %1521
  %v1523 = vsel %vm114, %v1508, %v1510
  %v1524 = vsel %vm114, %v1510, %v1512
  %v1525 = vsel %vm114, %v1512, %v1514
  %v1526 = vsel %vm114, %v1514, %v1516
  %v1527 = vsel %vm114, %v1516, %v1518
  %v1528 = vsel %vm114, %v1518, %v1520
  %v1529 = vsel %vm114, %v1520, %v1522
  %1538 = vst [vmem:[#allocation4 + $0x180] sm:$0xff] %v1523
  %1539 = vst [vmem:[#allocation4 + $0x188] sm:$0xff] %v1524
  %1540 = vst [vmem:[#allocation4 + $0x190] sm:$0xff] %v1525
  %1541 = vst [vmem:[#allocation4 + $0x198] sm:$0xff] %v1526
  %1542 = vst [vmem:[#allocation4 + $0x1a0] sm:$0xff] %v1527
  %1543 = vst [vmem:[#allocation4 + $0x1a8] sm:$0xff] %v1528
  %1544 = vst [vmem:[#allocation4 + $0x1b0] sm:$0xff] %v1529
  %1545 = vst.msk [vmem:[#allocation4 + $0x1b8] sm:$0xff] %vm452, %v1522
  %v1546 = vld [vmem:[#allocation3] sm:$0xff]
  %v1547 = vld [vmem:[#allocation3 + $0x8] sm:$0xff]
  %v1548 = vld [vmem:[#allocation3 + $0x10] sm:$0xff]
  %v1549 = vld [vmem:[#allocation3 + $0x18] sm:$0xff]
  %v1550 = vld [vmem:[#allocation3 + $0x20] sm:$0xff]
  %v1551 = vld [vmem:[#allocation3 + $0x28] sm:$0xff]
  %v1552 = vld [vmem:[#allocation3 + $0x30] sm:$0xff]
  %v1553 = vld [vmem:[#allocation3 + $0x38] sm:$0xff]
  %1562 = vrot.lane.b32.xlu0 %v1546, 46
  %v1563 = vpop.permute.xlu0 %1562
  %1564 = vrot.lane.b32.xlu0 %v1547, 46
  %v1565 = vpop.permute.xlu0 %1564
  %1566 = vrot.lane.b32.xlu0 %v1548, 46
  %v1567 = vpop.permute.xlu0 %1566
  %1568 = vrot.lane.b32.xlu0 %v1549, 46
  %v1569 = vpop.permute.xlu0 %1568
  %1570 = vrot.lane.b32.xlu0 %v1550, 46
  %v1571 = vpop.permute.xlu0 %1570
  %1572 = vrot.lane.b32.xlu0 %v1551, 46
  %v1573 = vpop.permute.xlu0 %1572
  %1574 = vrot.lane.b32.xlu0 %v1552, 46
  %v1575 = vpop.permute.xlu0 %1574
  %1576 = vrot.lane.b32.xlu0 %v1553, 46
  %v1577 = vpop.permute.xlu0 %1576
  %v1578 = vsel %vm125, %v1563, %v1565
  %v1579 = vsel %vm125, %v1565, %v1567
  %v1580 = vsel %vm125, %v1567, %v1569
  %v1581 = vsel %vm125, %v1569, %v1571
  %v1582 = vsel %vm125, %v1571, %v1573
  %v1583 = vsel %vm125, %v1573, %v1575
  %v1584 = vsel %vm125, %v1575, %v1577
  %1593 = vst [vmem:[#allocation4 + $0x1c0] sm:$0xff] %v1578
  %1594 = vst [vmem:[#allocation4 + $0x1c8] sm:$0xff] %v1579
  %1595 = vst [vmem:[#allocation4 + $0x1d0] sm:$0xff] %v1580
  %1596 = vst [vmem:[#allocation4 + $0x1d8] sm:$0xff] %v1581
  %1597 = vst [vmem:[#allocation4 + $0x1e0] sm:$0xff] %v1582
  %1598 = vst [vmem:[#allocation4 + $0x1e8] sm:$0xff] %v1583
  %1599 = vst [vmem:[#allocation4 + $0x1f0] sm:$0xff] %v1584
  %1600 = vst.msk [vmem:[#allocation4 + $0x1f8] sm:$0xff] %vm452, %v1577
  %v1601 = vld [vmem:[#allocation3] sm:$0xff]
  %v1602 = vld [vmem:[#allocation3 + $0x8] sm:$0xff]
  %v1603 = vld [vmem:[#allocation3 + $0x10] sm:$0xff]
  %v1604 = vld [vmem:[#allocation3 + $0x18] sm:$0xff]
  %v1605 = vld [vmem:[#allocation3 + $0x20] sm:$0xff]
  %v1606 = vld [vmem:[#allocation3 + $0x28] sm:$0xff]
  %v1607 = vld [vmem:[#allocation3 + $0x30] sm:$0xff]
  %v1608 = vld [vmem:[#allocation3 + $0x38] sm:$0xff]
  %1617 = vrot.lane.b32.xlu0 %v1601, 44
  %v1618 = vpop.permute.xlu0 %1617
  %1619 = vrot.lane.b32.xlu0 %v1602, 44
  %v1620 = vpop.permute.xlu0 %1619
  %1621 = vrot.lane.b32.xlu0 %v1603, 44
  %v1622 = vpop.permute.xlu0 %1621
  %1623 = vrot.lane.b32.xlu0 %v1604, 44
  %v1624 = vpop.permute.xlu0 %1623
  %1625 = vrot.lane.b32.xlu0 %v1605, 44
  %v1626 = vpop.permute.xlu0 %1625
  %1627 = vrot.lane.b32.xlu0 %v1606, 44
  %v1628 = vpop.permute.xlu0 %1627
  %1629 = vrot.lane.b32.xlu0 %v1607, 44
  %v1630 = vpop.permute.xlu0 %1629
  %1631 = vrot.lane.b32.xlu0 %v1608, 44
  %v1632 = vpop.permute.xlu0 %1631
  %v1633 = vsel %vm136, %v1618, %v1620
  %v1634 = vsel %vm136, %v1620, %v1622
  %v1635 = vsel %vm136, %v1622, %v1624
  %v1636 = vsel %vm136, %v1624, %v1626
  %v1637 = vsel %vm136, %v1626, %v1628
  %v1638 = vsel %vm136, %v1628, %v1630
  %v1639 = vsel %vm136, %v1630, %v1632
  %1648 = vst [vmem:[#allocation4 + $0x200] sm:$0xff] %v1633
  %1649 = vst [vmem:[#allocation4 + $0x208] sm:$0xff] %v1634
  %1650 = vst [vmem:[#allocation4 + $0x210] sm:$0xff] %v1635
  %1651 = vst [vmem:[#allocation4 + $0x218] sm:$0xff] %v1636
  %1652 = vst [vmem:[#allocation4 + $0x220] sm:$0xff] %v1637
  %1653 = vst [vmem:[#allocation4 + $0x228] sm:$0xff] %v1638
  %1654 = vst [vmem:[#allocation4 + $0x230] sm:$0xff] %v1639
  %1655 = vst.msk [vmem:[#allocation4 + $0x238] sm:$0xff] %vm452, %v1632
  %v1656 = vld [vmem:[#allocation4] sm:$0xff]
  %v1657 = vld [vmem:[#allocation4 + $0x8] sm:$0xff]
  %v1658 = vld [vmem:[#allocation4 + $0x10] sm:$0xff]
  %v1659 = vld [vmem:[#allocation4 + $0x18] sm:$0xff]
  %v1660 = vld [vmem:[#allocation4 + $0x20] sm:$0xff]
  %v1661 = vld [vmem:[#allocation4 + $0x28] sm:$0xff]
  %v1662 = vld [vmem:[#allocation4 + $0x30] sm:$0xff]
  %v1663 = vld [vmem:[#allocation4 + $0x38] sm:$0xff]
  %v1664 = vld [vmem:[#allocation4 + $0x40] sm:$0xff]
  %v1665 = vld [vmem:[#allocation4 + $0x48] sm:$0xff]
  %v1666 = vld [vmem:[#allocation4 + $0x50] sm:$0xff]
  %v1667 = vld [vmem:[#allocation4 + $0x58] sm:$0xff]
  %v1668 = vld [vmem:[#allocation4 + $0x60] sm:$0xff]
  %v1669 = vld [vmem:[#allocation4 + $0x68] sm:$0xff]
  %v1670 = vld [vmem:[#allocation4 + $0x70] sm:$0xff]
  %v1671 = vld [vmem:[#allocation4 + $0x78] sm:$0xff]
  %v1672 = vld [vmem:[#allocation4 + $0x80] sm:$0xff]
  %v1673 = vld [vmem:[#allocation4 + $0x88] sm:$0xff]
  %v1674 = vld [vmem:[#allocation4 + $0x90] sm:$0xff]
  %v1675 = vld [vmem:[#allocation4 + $0x98] sm:$0xff]
  %v1676 = vld [vmem:[#allocation4 + $0xa0] sm:$0xff]
  %v1677 = vld [vmem:[#allocation4 + $0xa8] sm:$0xff]
  %v1678 = vld [vmem:[#allocation4 + $0xb0] sm:$0xff]
  %v1679 = vld [vmem:[#allocation4 + $0xb8] sm:$0xff]
  %v1680 = vld [vmem:[#allocation4 + $0xc0] sm:$0xff]
  %v1681 = vld [vmem:[#allocation4 + $0xc8] sm:$0xff]
  %v1682 = vld [vmem:[#allocation4 + $0xd0] sm:$0xff]
  %v1683 = vld [vmem:[#allocation4 + $0xd8] sm:$0xff]
  %v1684 = vld [vmem:[#allocation4 + $0xe0] sm:$0xff]
  %v1685 = vld [vmem:[#allocation4 + $0xe8] sm:$0xff]
  %v1686 = vld [vmem:[#allocation4 + $0xf0] sm:$0xff]
  %v1687 = vld [vmem:[#allocation4 + $0xf8] sm:$0xff]
  %v1688 = vld [vmem:[#allocation4 + $0x100] sm:$0xff]
  %v1689 = vld [vmem:[#allocation4 + $0x108] sm:$0xff]
  %v1690 = vld [vmem:[#allocation4 + $0x110] sm:$0xff]
  %v1691 = vld [vmem:[#allocation4 + $0x118] sm:$0xff]
  %v1692 = vld [vmem:[#allocation4 + $0x120] sm:$0xff]
  %v1693 = vld [vmem:[#allocation4 + $0x128] sm:$0xff]
  %v1694 = vld [vmem:[#allocation4 + $0x130] sm:$0xff]
  %v1695 = vld [vmem:[#allocation4 + $0x138] sm:$0xff]
  %v1696 = vld [vmem:[#allocation4 + $0x140] sm:$0xff]
  %v1697 = vld [vmem:[#allocation4 + $0x148] sm:$0xff]
  %v1698 = vld [vmem:[#allocation4 + $0x150] sm:$0xff]
  %v1699 = vld [vmem:[#allocation4 + $0x158] sm:$0xff]
  %v1700 = vld [vmem:[#allocation4 + $0x160] sm:$0xff]
  %v1701 = vld [vmem:[#allocation4 + $0x168] sm:$0xff]
  %v1702 = vld [vmem:[#allocation4 + $0x170] sm:$0xff]
  %v1703 = vld [vmem:[#allocation4 + $0x178] sm:$0xff]
  %v1704 = vld [vmem:[#allocation4 + $0x180] sm:$0xff]
  %v1705 = vld [vmem:[#allocation4 + $0x188] sm:$0xff]
  %v1706 = vld [vmem:[#allocation4 + $0x190] sm:$0xff]
  %v1707 = vld [vmem:[#allocation4 + $0x198] sm:$0xff]
  %v1708 = vld [vmem:[#allocation4 + $0x1a0] sm:$0xff]
  %v1709 = vld [vmem:[#allocation4 + $0x1a8] sm:$0xff]
  %v1710 = vld [vmem:[#allocation4 + $0x1b0] sm:$0xff]
  %v1711 = vld [vmem:[#allocation4 + $0x1b8] sm:$0xff]
  %v1712 = vld [vmem:[#allocation4 + $0x1c0] sm:$0xff]
  %v1713 = vld [vmem:[#allocation4 + $0x1c8] sm:$0xff]
  %v1714 = vld [vmem:[#allocation4 + $0x1d0] sm:$0xff]
  %v1715 = vld [vmem:[#allocation4 + $0x1d8] sm:$0xff]
  %v1716 = vld [vmem:[#allocation4 + $0x1e0] sm:$0xff]
  %v1717 = vld [vmem:[#allocation4 + $0x1e8] sm:$0xff]
  %v1718 = vld [vmem:[#allocation4 + $0x1f0] sm:$0xff]
  %v1719 = vld [vmem:[#allocation4 + $0x1f8] sm:$0xff]
  %v1720 = vld [vmem:[#allocation4 + $0x200] sm:$0xff]
  %v1721 = vld [vmem:[#allocation4 + $0x208] sm:$0xff]
  %v1722 = vld [vmem:[#allocation4 + $0x210] sm:$0xff]
  %v1723 = vld [vmem:[#allocation4 + $0x218] sm:$0xff]
  %v1724 = vld [vmem:[#allocation4 + $0x220] sm:$0xff]
  %v1725 = vld [vmem:[#allocation4 + $0x228] sm:$0xff]
  %v1726 = vld [vmem:[#allocation4 + $0x230] sm:$0xff]
  %v1727 = vld [vmem:[#allocation4 + $0x238] sm:$0xff]
  %v1728 = vld [vmem:[%s6] sm:$0xff]
  %v1729 = vld [vmem:[%s7] sm:$0xff]
  %1731 = vset.pattern.permute.xlu0 0
  %1732 = vperm.xlu0 %1731, %v1729
  %v1733 = vpop.permute.xlu0 %1732
  %v1736 = vsel %vm973, %v1728, 0
  %1738 = vmatpush.msra.mxu0 0.0
  %1739 = vmatpush.msra.mxu0 0.0
  %1740 = vmatpush.msra.mxu0 0.0
  %1741 = vmatpush.msra.mxu0 0.0
  %1742 = vmatpush.msra.mxu0 0.0
  %1743 = vmatpush.msra.mxu0 0.0
  %1744 = vmatpush.msra.mxu0 0.0
  %1745 = vmatpush.msra.mxu0 %v1720
  %1746 = vmatpush.msra.mxu0 %v1712
  %1747 = vmatpush.msra.mxu0 %v1704
  %1748 = vmatpush.msra.mxu0 %v1696
  %1749 = vmatpush.msra.mxu0 %v1688
  %1750 = vmatpush.msra.mxu0 %v1680
  %1751 = vmatpush.msra.mxu0 %v1672
  %1752 = vmatpush.msra.mxu0 %v1664
  %1753 = vmatpush.msra.mxu0 %v1656
  %1754 = vmatmul.f32.gmra.mxu0 %v1736
  %v1755 = vpop.f32.mrf.mxu0
  %v1756 = vadd.f32 %v1733, %v1755
  %1757 = vdwg.mxu0
  %1758 = vmatpush.msra.mxu0 0.0
  %1759 = vmatpush.msra.mxu0 0.0
  %1760 = vmatpush.msra.mxu0 0.0
  %1761 = vmatpush.msra.mxu0 0.0
  %1762 = vmatpush.msra.mxu0 0.0
  %1763 = vmatpush.msra.mxu0 0.0
  %1764 = vmatpush.msra.mxu0 0.0
  %1765 = vmatpush.msra.mxu0 %v1721
  %1766 = vmatpush.msra.mxu0 %v1713
  %1767 = vmatpush.msra.mxu0 %v1705
  %1768 = vmatpush.msra.mxu0 %v1697
  %1769 = vmatpush.msra.mxu0 %v1689
  %1770 = vmatpush.msra.mxu0 %v1681
  %1771 = vmatpush.msra.mxu0 %v1673
  %1772 = vmatpush.msra.mxu0 %v1665
  %1773 = vmatpush.msra.mxu0 %v1657
  %1774 = vmatmul.f32.gmra.mxu0 %v1736
  %v1775 = vpop.f32.mrf.mxu0
  %v1776 = vadd.f32 %v1733, %v1775
  %1777 = vdwg.mxu0
  %1778 = vmatpush.msra.mxu0 0.0
  %1779 = vmatpush.msra.mxu0 0.0
  %1780 = vmatpush.msra.mxu0 0.0
  %1781 = vmatpush.msra.mxu0 0.0
  %1782 = vmatpush.msra.mxu0 0.0
  %1783 = vmatpush.msra.mxu0 0.0
  %1784 = vmatpush.msra.mxu0 0.0
  %1785 = vmatpush.msra.mxu0 %v1722
  %1786 = vmatpush.msra.mxu0 %v1714
  %1787 = vmatpush.msra.mxu0 %v1706
  %1788 = vmatpush.msra.mxu0 %v1698
  %1789 = vmatpush.msra.mxu0 %v1690
  %1790 = vmatpush.msra.mxu0 %v1682
  %1791 = vmatpush.msra.mxu0 %v1674
  %1792 = vmatpush.msra.mxu0 %v1666
  %1793 = vmatpush.msra.mxu0 %v1658
  %1794 = vmatmul.f32.gmra.mxu0 %v1736
  %v1795 = vpop.f32.mrf.mxu0
  %v1796 = vadd.f32 %v1733, %v1795
  %1797 = vdwg.mxu0
  %1798 = vmatpush.msra.mxu0 0.0
  %1799 = vmatpush.msra.mxu0 0.0
  %1800 = vmatpush.msra.mxu0 0.0
  %1801 = vmatpush.msra.mxu0 0.0
  %1802 = vmatpush.msra.mxu0 0.0
  %1803 = vmatpush.msra.mxu0 0.0
  %1804 = vmatpush.msra.mxu0 0.0
  %1805 = vmatpush.msra.mxu0 %v1723
  %1806 = vmatpush.msra.mxu0 %v1715
  %1807 = vmatpush.msra.mxu0 %v1707
  %1808 = vmatpush.msra.mxu0 %v1699
  %1809 = vmatpush.msra.mxu0 %v1691
  %1810 = vmatpush.msra.mxu0 %v1683
  %1811 = vmatpush.msra.mxu0 %v1675
  %1812 = vmatpush.msra.mxu0 %v1667
  %1813 = vmatpush.msra.mxu0 %v1659
  %1814 = vmatmul.f32.gmra.mxu0 %v1736
  %v1815 = vpop.f32.mrf.mxu0
  %v1816 = vadd.f32 %v1733, %v1815
  %1817 = vdwg.mxu0
  %1818 = vmatpush.msra.mxu0 0.0
  %1819 = vmatpush.msra.mxu0 0.0
  %1820 = vmatpush.msra.mxu0 0.0
  %1821 = vmatpush.msra.mxu0 0.0
  %1822 = vmatpush.msra.mxu0 0.0
  %1823 = vmatpush.msra.mxu0 0.0
  %1824 = vmatpush.msra.mxu0 0.0
  %1825 = vmatpush.msra.mxu0 %v1724
  %1826 = vmatpush.msra.mxu0 %v1716
  %1827 = vmatpush.msra.mxu0 %v1708
  %1828 = vmatpush.msra.mxu0 %v1700
  %1829 = vmatpush.msra.mxu0 %v1692
  %1830 = vmatpush.msra.mxu0 %v1684
  %1831 = vmatpush.msra.mxu0 %v1676
  %1832 = vmatpush.msra.mxu0 %v1668
  %1833 = vmatpush.msra.mxu0 %v1660
  %1834 = vmatmul.f32.gmra.mxu0 %v1736
  %v1835 = vpop.f32.mrf.mxu0
  %v1836 = vadd.f32 %v1733, %v1835
  %1837 = vdwg.mxu0
  %1838 = vmatpush.msra.mxu0 0.0
  %1839 = vmatpush.msra.mxu0 0.0
  %1840 = vmatpush.msra.mxu0 0.0
  %1841 = vmatpush.msra.mxu0 0.0
  %1842 = vmatpush.msra.mxu0 0.0
  %1843 = vmatpush.msra.mxu0 0.0
  %1844 = vmatpush.msra.mxu0 0.0
  %1845 = vmatpush.msra.mxu0 %v1725
  %1846 = vmatpush.msra.mxu0 %v1717
  %1847 = vmatpush.msra.mxu0 %v1709
  %1848 = vmatpush.msra.mxu0 %v1701
  %1849 = vmatpush.msra.mxu0 %v1693
  %1850 = vmatpush.msra.mxu0 %v1685
  %1851 = vmatpush.msra.mxu0 %v1677
  %1852 = vmatpush.msra.mxu0 %v1669
  %1853 = vmatpush.msra.mxu0 %v1661
  %1854 = vmatmul.f32.gmra.mxu0 %v1736
  %v1855 = vpop.f32.mrf.mxu0
  %v1856 = vadd.f32 %v1733, %v1855
  %1857 = vdwg.mxu0
  %1858 = vmatpush.msra.mxu0 0.0
  %1859 = vmatpush.msra.mxu0 0.0
  %1860 = vmatpush.msra.mxu0 0.0
  %1861 = vmatpush.msra.mxu0 0.0
  %1862 = vmatpush.msra.mxu0 0.0
  %1863 = vmatpush.msra.mxu0 0.0
  %1864 = vmatpush.msra.mxu0 0.0
  %1865 = vmatpush.msra.mxu0 %v1726
  %1866 = vmatpush.msra.mxu0 %v1718
  %1867 = vmatpush.msra.mxu0 %v1710
  %1868 = vmatpush.msra.mxu0 %v1702
  %1869 = vmatpush.msra.mxu0 %v1694
  %1870 = vmatpush.msra.mxu0 %v1686
  %1871 = vmatpush.msra.mxu0 %v1678
  %1872 = vmatpush.msra.mxu0 %v1670
  %1873 = vmatpush.msra.mxu0 %v1662
  %1874 = vmatmul.f32.gmra.mxu0 %v1736
  %v1875 = vpop.f32.mrf.mxu0
  %v1876 = vadd.f32 %v1733, %v1875
  %1877 = vdwg.mxu0
  %1878 = vmatpush.msra.mxu0 0.0
  %1879 = vmatpush.msra.mxu0 0.0
  %1880 = vmatpush.msra.mxu0 0.0
  %1881 = vmatpush.msra.mxu0 0.0
  %1882 = vmatpush.msra.mxu0 0.0
  %1883 = vmatpush.msra.mxu0 0.0
  %1884 = vmatpush.msra.mxu0 0.0
  %1885 = vmatpush.msra.mxu0 %v1727
  %1886 = vmatpush.msra.mxu0 %v1719
  %1887 = vmatpush.msra.mxu0 %v1711
  %1888 = vmatpush.msra.mxu0 %v1703
  %1889 = vmatpush.msra.mxu0 %v1695
  %1890 = vmatpush.msra.mxu0 %v1687
  %1891 = vmatpush.msra.mxu0 %v1679
  %1892 = vmatpush.msra.mxu0 %v1671
  %1893 = vmatpush.msra.mxu0 %v1663
  %1894 = vmatmul.f32.gmra.mxu0 %v1736
  %v1895 = vpop.f32.mrf.mxu0
  %v1896 = vadd.f32 %v1733, %v1895
  %1897 = vdwg.mxu0
  %v1898 = vxor.u32 %v1756, 2147483648
  %v1899 = vxor.u32 %v1776, 2147483648
  %v1900 = vxor.u32 %v1796, 2147483648
  %v1901 = vxor.u32 %v1816, 2147483648
  %v1902 = vxor.u32 %v1836, 2147483648
  %v1903 = vxor.u32 %v1856, 2147483648
  %v1904 = vxor.u32 %v1876, 2147483648
  %v1905 = vxor.u32 %v1896, 2147483648
  %v1906 = vmul.f32 %v1898, 1.442695
  %v1907 = vpow.pop %v1906
  %v1908 = vmul.f32 %v1899, 1.442695
  %v1909 = vpow.pop %v1908
  %v1910 = vmul.f32 %v1900, 1.442695
  %v1911 = vpow.pop %v1910
  %v1912 = vmul.f32 %v1901, 1.442695
  %v1913 = vpow.pop %v1912
  %v1914 = vmul.f32 %v1902, 1.442695
  %v1915 = vpow.pop %v1914
  %v1916 = vmul.f32 %v1903, 1.442695
  %v1917 = vpow.pop %v1916
  %v1918 = vmul.f32 %v1904, 1.442695
  %v1919 = vpow.pop %v1918
  %v1920 = vmul.f32 %v1905, 1.442695
  %v1921 = vpow.pop %v1920
  %v1922 = vadd.f32 %v1907, 1.0
  %v1923 = vadd.f32 %v1909, 1.0
  %v1924 = vadd.f32 %v1911, 1.0
  %v1925 = vadd.f32 %v1913, 1.0
  %v1926 = vadd.f32 %v1915, 1.0
  %v1927 = vadd.f32 %v1917, 1.0
  %v1928 = vadd.f32 %v1919, 1.0
  %v1929 = vadd.f32 %v1921, 1.0
  %v1930 = vrcp.pop %v1922
  %v1931 = vmul.f32 %v1922, %v1930
  %v1932 = vsub.f32 1.0, %v1931
  %v1933 = vmul.f32 %v1930, %v1932
  %v1934 = vadd.f32 %v1930, %v1933
  %vm1935 = vweird.f32 %v1922
  %vm1936 = vweird.f32 %v1930
  %vm1937 = vmor %vm1935, %vm1936
  %v1938 = vsel %vm1937, %v1930, %v1934
  %v1939 = vand.u32 2147483647, %v1922
  %vm1940 = vcmp.eq.f32.partialorder %v1939, 8.507059e+37
  %v1941 = vand.u32 %v1922, 2147483648
  %v1942 = vor.u32 1.1754944e-38, %v1941
  %v1943 = vsel %vm1940, %v1942, %v1938
  %v1944 = vmul.f32 1.0, %v1943
  %v1945 = vrcp.pop %v1923
  %v1946 = vmul.f32 %v1923, %v1945
  %v1947 = vsub.f32 1.0, %v1946
  %v1948 = vmul.f32 %v1945, %v1947
  %v1949 = vadd.f32 %v1945, %v1948
  %vm1950 = vweird.f32 %v1923
  %vm1951 = vweird.f32 %v1945
  %vm1952 = vmor %vm1950, %vm1951
  %v1953 = vsel %vm1952, %v1945, %v1949
  %v1954 = vand.u32 2147483647, %v1923
  %vm1955 = vcmp.eq.f32.partialorder %v1954, 8.507059e+37
  %v1956 = vand.u32 %v1923, 2147483648
  %v1957 = vor.u32 1.1754944e-38, %v1956
  %v1958 = vsel %vm1955, %v1957, %v1953
  %v1959 = vmul.f32 1.0, %v1958
  %v1960 = vrcp.pop %v1924
  %v1961 = vmul.f32 %v1924, %v1960
  %v1962 = vsub.f32 1.0, %v1961
  %v1963 = vmul.f32 %v1960, %v1962
  %v1964 = vadd.f32 %v1960, %v1963
  %vm1965 = vweird.f32 %v1924
  %vm1966 = vweird.f32 %v1960
  %vm1967 = vmor %vm1965, %vm1966
  %v1968 = vsel %vm1967, %v1960, %v1964
  %v1969 = vand.u32 2147483647, %v1924
  %vm1970 = vcmp.eq.f32.partialorder %v1969, 8.507059e+37
  %v1971 = vand.u32 %v1924, 2147483648
  %v1972 = vor.u32 1.1754944e-38, %v1971
  %v1973 = vsel %vm1970, %v1972, %v1968
  %v1974 = vmul.f32 1.0, %v1973
  %v1975 = vrcp.pop %v1925
  %v1976 = vmul.f32 %v1925, %v1975
  %v1977 = vsub.f32 1.0, %v1976
  %v1978 = vmul.f32 %v1975, %v1977
  %v1979 = vadd.f32 %v1975, %v1978
  %vm1980 = vweird.f32 %v1925
  %vm1981 = vweird.f32 %v1975
  %vm1982 = vmor %vm1980, %vm1981
  %v1983 = vsel %vm1982, %v1975, %v1979
  %v1984 = vand.u32 2147483647, %v1925
  %vm1985 = vcmp.eq.f32.partialorder %v1984, 8.507059e+37
  %v1986 = vand.u32 %v1925, 2147483648
  %v1987 = vor.u32 1.1754944e-38, %v1986
  %v1988 = vsel %vm1985, %v1987, %v1983
  %v1989 = vmul.f32 1.0, %v1988
  %v1990 = vrcp.pop %v1926
  %v1991 = vmul.f32 %v1926, %v1990
  %v1992 = vsub.f32 1.0, %v1991
  %v1993 = vmul.f32 %v1990, %v1992
  %v1994 = vadd.f32 %v1990, %v1993
  %vm1995 = vweird.f32 %v1926
  %vm1996 = vweird.f32 %v1990
  %vm1997 = vmor %vm1995, %vm1996
  %v1998 = vsel %vm1997, %v1990, %v1994
  %v1999 = vand.u32 2147483647, %v1926
  %vm2000 = vcmp.eq.f32.partialorder %v1999, 8.507059e+37
  %v2001 = vand.u32 %v1926, 2147483648
  %v2002 = vor.u32 1.1754944e-38, %v2001
  %v2003 = vsel %vm2000, %v2002, %v1998
  %v2004 = vmul.f32 1.0, %v2003
  %v2005 = vrcp.pop %v1927
  %v2006 = vmul.f32 %v1927, %v2005
  %v2007 = vsub.f32 1.0, %v2006
  %v2008 = vmul.f32 %v2005, %v2007
  %v2009 = vadd.f32 %v2005, %v2008
  %vm2010 = vweird.f32 %v1927
  %vm2011 = vweird.f32 %v2005
  %vm2012 = vmor %vm2010, %vm2011
  %v2013 = vsel %vm2012, %v2005, %v2009
  %v2014 = vand.u32 2147483647, %v1927
  %vm2015 = vcmp.eq.f32.partialorder %v2014, 8.507059e+37
  %v2016 = vand.u32 %v1927, 2147483648
  %v2017 = vor.u32 1.1754944e-38, %v2016
  %v2018 = vsel %vm2015, %v2017, %v2013
  %v2019 = vmul.f32 1.0, %v2018
  %v2020 = vrcp.pop %v1928
  %v2021 = vmul.f32 %v1928, %v2020
  %v2022 = vsub.f32 1.0, %v2021
  %v2023 = vmul.f32 %v2020, %v2022
  %v2024 = vadd.f32 %v2020, %v2023
  %vm2025 = vweird.f32 %v1928
  %vm2026 = vweird.f32 %v2020
  %vm2027 = vmor %vm2025, %vm2026
  %v2028 = vsel %vm2027, %v2020, %v2024
  %v2029 = vand.u32 2147483647, %v1928
  %vm2030 = vcmp.eq.f32.partialorder %v2029, 8.507059e+37
  %v2031 = vand.u32 %v1928, 2147483648
  %v2032 = vor.u32 1.1754944e-38, %v2031
  %v2033 = vsel %vm2030, %v2032, %v2028
  %v2034 = vmul.f32 1.0, %v2033
  %v2035 = vrcp.pop %v1929
  %v2036 = vmul.f32 %v1929, %v2035
  %v2037 = vsub.f32 1.0, %v2036
  %v2038 = vmul.f32 %v2035, %v2037
  %v2039 = vadd.f32 %v2035, %v2038
  %vm2040 = vweird.f32 %v1929
  %vm2041 = vweird.f32 %v2035
  %vm2042 = vmor %vm2040, %vm2041
  %v2043 = vsel %vm2042, %v2035, %v2039
  %v2044 = vand.u32 2147483647, %v1929
  %vm2045 = vcmp.eq.f32.partialorder %v2044, 8.507059e+37
  %v2046 = vand.u32 %v1929, 2147483648
  %v2047 = vor.u32 1.1754944e-38, %v2046
  %v2048 = vsel %vm2045, %v2047, %v2043
  %v2049 = vmul.f32 1.0, %v2048
  %v2050 = vsel %vm371, %v1944, 0.0
  %v2051 = vsel %vm372, %v1959, 0.0
  %v2052 = vsel %vm373, %v1974, 0.0
  %v2053 = vsel %vm374, %v1989, 0.0
  %v2054 = vsel %vm375, %v2004, 0.0
  %v2055 = vsel %vm376, %v2019, 0.0
  %v2056 = vsel %vm377, %v2034, 0.0
  %v2057 = vsel %vm378, %v2049, 0.0
  %v2066 = vrot.slane %v2051, 7
  %v2067 = vrot.slane %v2052, 6
  %v2068 = vrot.slane %v2053, 5
  %v2069 = vrot.slane %v2054, 4
  %v2070 = vrot.slane %v2055, 3
  %v2071 = vrot.slane %v2056, 2
  %v2072 = vrot.slane %v2057, 1
  %v2073 = vsel %vm169, %v2050, %v2066
  %vm2074 = vcmask 1042434
  %v2075 = vsel %vm2074, %v2067, %v2068
  %vm2076 = vcmask 1041408
  %v2077 = vsel %vm2076, %v2073, %v2075
  %vm2078 = vcmask 1044484
  %v2079 = vsel %vm2078, %v2069, %v2070
  %vm2080 = vcmask 1046534
  %v2081 = vsel %vm2080, %v2071, %v2072
  %vm2082 = vcmask 1045508
  %v2083 = vsel %vm2082, %v2079, %v2081
  %vm2084 = vcmask 1043456
  %v2085 = vsel %vm2084, %v2077, %v2083
  %2087 = vst.msk [vmem:[%s8] sm:$0xff] %vm51, %v2085
  // Predicated region
  $region34: #{addnet_forward.1} parent=0 // pred_check
    _
  $region35: #{addnet_forward.1} parent=0 // pred_check_branch
    %2089 = sbr.rel (0) target = $region37
  $region36: #{addnet_forward.1} parent=0 // pred_region
    _
  $region37: #{addnet_forward.1} parent=0 // pred_fallthru
    _
  // Predicated region
  $region38: #{addnet_forward.1} parent=0 // pred_check
    _
  $region39: #{addnet_forward.1} parent=0 // pred_check_branch
    %2091 = sbr.rel (0) target = $region41
  $region40: #{addnet_forward.1} parent=0 // pred_region
    _
  $region41: #{addnet_forward.1} parent=0 // pred_fallthru
    _

</llo_original>
